<compile_context>
chip_gen: v5e
topology: v5e:2x2
jax: 0.10.0
libtpu: 0.0.40
codegen_flags: <defaults>
</compile_context>

<pallas_src>
import functools

import jax
import jax.numpy as jnp
from jax import lax
from jax.experimental import pallas as pl
from jax.experimental.pallas import tpu as pltpu


def _bilstm_kernel(x_ref,      # (T*B, 2F)  row t*B+b = [x[b,t] | x[b,T-1-t]]
                   wih_ref,    # (2F, 8H)   fused, gate-interleaved input weights (f32)
                   whh_ref,    # (2H, 8H)   fused, gate-interleaved recurrent weights (bf16)
                   b_ref,      # (1, 8H)    fused bias (b_ih + b_hh, both dirs)
                   out_ref,    # (T*B, 2H)  row t*B+b = [h_fwd(t) | h_bwd(T-1-t)]
                   g_ref,      # scratch (T*B, 8H) f32: precomputed input gates
                   *, T, B):
    Hd = out_ref.shape[-1] // 2
    H2 = 2 * Hd    # fused gate-slab width (fwd+bwd)

    # ---- 1) Hoisted input projection: ONE GEMM for all T steps and both
    #         directions, bias folded in, written to a tile-aligned flat slab.
    #         (Backward half is already time-reversed via the x/wih packing.)
    g_ref[...] = (
        jnp.dot(x_ref[...], wih_ref[...], preferred_element_type=jnp.float32)
        + b_ref[...])

    # ---- 2) Serial recurrence, fully unrolled (T static): static slices only.
    h = jnp.zeros((B, H2), jnp.float32)   # [h_fwd | h_bwd], carried in vregs
    c = jnp.zeros((B, H2), jnp.float32)   # [c_fwd | c_bwd]
    for t in range(T):
        r0 = t * B
        # One fused recurrent matmul for both directions; bf16 operands on the
        # MXU, f32 accumulation.  whh re-read from VMEM each step (cheap; the
        # compiler may hoist) to avoid pinning its vregs across the chain.
        rec = jnp.dot(h.astype(whh_ref.dtype), whh_ref[...],
                      preferred_element_type=jnp.float32)          # (B, 8H)
        g = g_ref[r0:r0 + B, :] + rec                              # (B, 8H)

        # Gate order i, f, g, o; each slab is 2H wide = [fwd | bwd].
        i = jax.nn.sigmoid(g[:, 0 * H2:1 * H2])
        f = jax.nn.sigmoid(g[:, 1 * H2:2 * H2])
        gg = jnp.tanh(g[:, 2 * H2:3 * H2])
        o = jax.nn.sigmoid(g[:, 3 * H2:4 * H2])
        c = f * c + i * gg
        h = o * jnp.tanh(c)

        # Single full-row-block store per step (no column slicing).
        out_ref[r0:r0 + B, :] = h


def _pack_params(params, hidden_dim, rec_dtype=jnp.bfloat16):
    """Fuse per-direction LSTM params into the kernel's interleaved layouts."""
    wih_f, whh_f, b_f, wih_b, whh_b, b_b = params
    H = hidden_dim
    F = wih_f.shape[0]

    def interleave(fwd, bwd):
        # fwd/bwd: (R, 4H) in gate order i,f,g,o  ->  (R, 8H) with columns
        # [i_f i_b | f_f f_b | g_f g_b | o_f o_b] (each fused slab 2H wide).
        R = fwd.shape[0]
        return jnp.stack([fwd.reshape(R, 4, H), bwd.reshape(R, 4, H)],
                         axis=2).reshape(R, 8 * H)

    # Input weights: rows 0:F feed the forward columns (consume x_t), rows
    # F:2F feed the backward columns (consume x_{T-1-t}).
    zf = jnp.zeros((F, 4 * H), wih_f.dtype)
    wih_fused = jnp.concatenate(
        [interleave(wih_f, zf), interleave(zf, wih_b)], axis=0)    # (2F, 8H)

    # Recurrent weights: rows 0:H multiply h_fwd, rows H:2H multiply h_bwd.
    zh = jnp.zeros((H, 4 * H), whh_f.dtype)
    whh_fused = jnp.concatenate(
        [interleave(whh_f, zh), interleave(zh, whh_b)], axis=0)    # (2H, 8H)
    whh_fused = whh_fused.astype(rec_dtype)   # bf16 recurrent path (MXU-native)

    b_fused = interleave(b_f, b_b)                                 # (1, 8H)
    return wih_fused, whh_fused, b_fused


@functools.partial(jax.jit, static_argnames=("hidden_dim",))
def row_encoder_forward(features, params, *, hidden_dim):
    """features: (B, C, H, W) float32 -> (B, H, 2*hidden_dim) float32."""
    B, C, Himg, Wimg = features.shape
    T = Himg
    F = C * Wimg
    H = hidden_dim

    # PyTorch .view(B, H, -1) == raw row-major reshape.  Build the flat,
    # time-major, fused fwd/bwd input slab in XLA (fuses with the transpose):
    # row t*B+b = [x[b,t] | x[b,T-1-t]]  -> backward time reversal is baked in.
    x_btf = jnp.reshape(features, (B, T, F))
    x_tbf = jnp.transpose(x_btf, (1, 0, 2))                      # (T, B, F)
    x_cat = jnp.concatenate([x_tbf, x_tbf[::-1]], axis=-1)       # (T, B, 2F)
    x2d = jnp.reshape(x_cat, (T * B, 2 * F))                     # (T*B, 2F)

    wih_fb, whh_fb, b_fb = _pack_params(params, H)

    # VMEM budget from actual buffer arithmetic (x + weights + g scratch + out),
    # with 2x headroom; clamp to [32 MiB, 100 MiB] (v5e/v6e have 128 MiB; on
    # v7x's 64 MiB chunk the gate GEMM instead -- see TODO at top).
    f32b = 4
    buf_bytes = (x2d.size * f32b + wih_fb.size * f32b + whh_fb.size * 2
                 + b_fb.size * f32b + T * B * 2 * H * f32b
                 + T * B * 8 * H * f32b)
    vmem_limit = int(min(100 * 2**20, max(32 * 2**20, 2 * buf_bytes)))

    # Advisory cost hint for XLA scheduling around this latency-bound call.
    cost = pl.CostEstimate(
        flops=2 * (T * B) * (2 * F) * (8 * H) + 2 * T * B * (2 * H) * (8 * H),
        transcendentals=5 * T * B * 2 * H,
        bytes_accessed=(x2d.size * f32b + wih_fb.size * f32b + whh_fb.size * 2
                        + b_fb.size * f32b + T * B * 2 * H * f32b),
    )

    vmem = pl.BlockSpec(memory_space=pltpu.MemorySpace.VMEM)
    out2d = pl.pallas_call(
        functools.partial(_bilstm_kernel, T=T, B=B),
        out_shape=jax.ShapeDtypeStruct((T * B, 2 * H), jnp.float32),
        in_specs=[vmem] * 4,
        out_specs=vmem,
        scratch_shapes=[pltpu.VMEM((T * B, 8 * H), jnp.float32)],
        compiler_params=pltpu.CompilerParams(vmem_limit_bytes=vmem_limit),
        cost_estimate=cost,
    )(x2d, wih_fb, whh_fb, b_fb)

    # (T*B, 2H) -> (T, B, 2H); the backward half was produced in reversed time
    # order, flip it once, then go batch-major.  All cheap XLA copies.
    out_tm = jnp.reshape(out2d, (T, B, 2 * H))
    out_tm = jnp.concatenate([out_tm[:, :, :H], out_tm[::-1, :, H:]], axis=-1)
    return jnp.transpose(out_tm, (1, 0, 2))                      # (B, T, 2H)


def init_params(key, feature_dim, hidden_dim):
    """Deterministic init matching nn.LSTM parameter shapes (gate order i,f,g,o)."""
    k = 1.0 / jnp.sqrt(hidden_dim)
    keys = jax.random.split(key, 8)

    def u(kk, shape):
        return jax.random.uniform(kk, shape, jnp.float32, minval=-k, maxval=k)

    # PyTorch stores weight_ih_l0: (4H, F), weight_hh_l0: (4H, H); we keep the
    # transposed layouts so x @ W works directly.
    wih_f = u(keys[0], (feature_dim, 4 * hidden_dim))
    whh_f = u(keys[1], (hidden_dim, 4 * hidden_dim))
    b_f = (u(keys[2], (1, 4 * hidden_dim)) + u(keys[3], (1, 4 * hidden_dim)))
    wih_b = u(keys[4], (feature_dim, 4 * hidden_dim))
    whh_b = u(keys[5], (hidden_dim, 4 * hidden_dim))
    b_b = (u(keys[6], (1, 4 * hidden_dim)) + u(keys[7], (1, 4 * hidden_dim)))
    return (wih_f, whh_f, b_f, wih_b, whh_b, b_b)


def _reference_bilstm(x, params, hidden_dim):
    """Pure-JAX f32 reference (lax.scan) of the PyTorch bidirectional LSTM."""
    wih_f, whh_f, b_f, wih_b, whh_b, b_b = params
    B = x.shape[0]
    Hd = hidden_dim

    def make_step(wih, whh, b):
        def step(carry, x_t):
            h, c = carry
            g = x_t @ wih + h @ whh + b
            i = jax.nn.sigmoid(g[:, 0 * Hd:1 * Hd])
            f = jax.nn.sigmoid(g[:, 1 * Hd:2 * Hd])
            gg = jnp.tanh(g[:, 2 * Hd:3 * Hd])
            o = jax.nn.sigmoid(g[:, 3 * Hd:4 * Hd])
            c_new = f * c + i * gg
            h_new = o * jnp.tanh(c_new)
            return (h_new, c_new), h_new
        return step

    x_tm = jnp.transpose(x, (1, 0, 2))  # (T, B, F)
    zeros = (jnp.zeros((B, Hd), jnp.float32), jnp.zeros((B, Hd), jnp.float32))
    _, hs_f = lax.scan(make_step(wih_f, whh_f, b_f), zeros, x_tm)
    _, hs_b = lax.scan(make_step(wih_b, whh_b, b_b), zeros, x_tm[::-1])
    hs_b = hs_b[::-1]
    out = jnp.concatenate([hs_f, hs_b], axis=-1)  # (T, B, 2H)
    return jnp.transpose(out, (1, 0, 2))


if __name__ == "__main__":
    # Small shapes: B=2, C=4, H=16 (sequence length), W=16 -> feature_dim=64
    B, C, Himg, Wimg = 2, 4, 16, 16
    hidden_dim = 32
    feature_dim = C * Wimg

    key = jax.random.PRNGKey(0)
    k_x, k_p = jax.random.split(key)
    features = jax.random.normal(k_x, (B, C, Himg, Wimg), jnp.float32)
    params = init_params(k_p, feature_dim, hidden_dim)

    out = row_encoder_forward(features, params, hidden_dim=hidden_dim)
    out = jax.block_until_ready(out)

    assert out.shape == (B, Himg, 2 * hidden_dim), out.shape

    ref = _reference_bilstm(jnp.reshape(features, (B, Himg, feature_dim)),
                            params, hidden_dim)
    # Tolerance loosened vs. the f32 reference because the recurrent matmul
    # runs with bf16 operands (f32 accumulation) on the MXU.
    assert jnp.allclose(out, ref, atol=2e-2, rtol=2e-2), "mismatch vs reference"

    print("KERNEL_OK")
</pallas_src>

<mosaic_0001>
module attributes {stable_mosaic.version = 11 : i64} {
  func.func @_bilstm_kernel(%arg0: memref<32x128xf32, #tpu.memory_space<vmem>>, %arg1: memref<128x256xf32, #tpu.memory_space<vmem>>, %arg2: memref<64x256xbf16, #tpu.memory_space<vmem>>, %arg3: memref<1x256xf32, #tpu.memory_space<vmem>>, %arg4: memref<32x64xf32, #tpu.memory_space<vmem>>, %arg5: memref<32x256xf32, #tpu.memory_space<vmem>>) attributes {dimension_semantics = [], scalar_prefetch = 0 : i64, scratch_operands = 1 : i64, tpu.core_type = #tpu.core_type<tc>} {
    %c0 = arith.constant 0 : index
    %c0_0 = arith.constant 0 : index
    %0 = vector.load %arg0[%c0, %c0_0] : memref<32x128xf32, #tpu.memory_space<vmem>>, vector<32x128xf32>
    %c0_1 = arith.constant 0 : index
    %c0_2 = arith.constant 0 : index
    %1 = vector.load %arg1[%c0_1, %c0_2] : memref<128x256xf32, #tpu.memory_space<vmem>>, vector<128x256xf32>
    %cst = arith.constant dense<0.000000e+00> : vector<32x256xf32>
    %2 = tpu.matmul %0, %1, %cst {dimension_numbers = #tpu.dot_dimension_numbers<[1], [0], [0], [1], [0, 0, 1, 1], [], []>} : vector<32x128xf32>, vector<128x256xf32>, vector<32x256xf32> -> vector<32x256xf32>
    %c0_3 = arith.constant 0 : index
    %c0_4 = arith.constant 0 : index
    %3 = vector.load %arg3[%c0_3, %c0_4] : memref<1x256xf32, #tpu.memory_space<vmem>>, vector<1x256xf32>
    %4 = vector.broadcast %3 : vector<1x256xf32> to vector<32x256xf32>
    %5 = arith.addf %2, %4 : vector<32x256xf32>
    %c0_5 = arith.constant 0 : index
    %c0_6 = arith.constant 0 : index
    %6 = vector.load %arg5[%c0_5, %c0_6] : memref<32x256xf32, #tpu.memory_space<vmem>>, vector<32x256xf32>
    tpu.vector_store %arg5[%c0_5, %c0_6], %5 {strides = array<i32>} : memref<32x256xf32, #tpu.memory_space<vmem>>, vector<32x256xf32>,
    %cst_7 = arith.constant 0.000000e+00 : f32
    %7 = vector.broadcast %cst_7 : f32 to vector<2x64xf32>
    %cst_8 = arith.constant 0.000000e+00 : f32
    %8 = vector.broadcast %cst_8 : f32 to vector<2x64xf32>
    %9 = arith.truncf %7 : vector<2x64xf32> to vector<2x64xbf16>
    %c0_9 = arith.constant 0 : index
    %c0_10 = arith.constant 0 : index
    %10 = vector.load %arg2[%c0_9, %c0_10] : memref<64x256xbf16, #tpu.memory_space<vmem>>, vector<64x256xbf16>
    %cst_11 = arith.constant dense<0.000000e+00> : vector<2x256xf32>
    %11 = tpu.matmul %9, %10, %cst_11 {dimension_numbers = #tpu.dot_dimension_numbers<[1], [0], [0], [1], [0, 0, 1, 1], [], []>} : vector<2x64xbf16>, vector<64x256xbf16>, vector<2x256xf32> -> vector<2x256xf32>
    %c0_12 = arith.constant 0 : index
    %c0_13 = arith.constant 0 : index
    %12 = vector.load %arg5[%c0_12, %c0_13] : memref<32x256xf32, #tpu.memory_space<vmem>>, vector<2x256xf32>
    %13 = arith.addf %12, %11 : vector<2x256xf32>
    %14 = vector.extract_strided_slice %13 {offsets = [0, 0], sizes = [2, 64], strides = [1, 1]} : vector<2x256xf32> to vector<2x64xf32>
    %15 = arith.negf %14 : vector<2x64xf32>
    %16 = math.exp %15 : vector<2x64xf32>
    %cst_14 = arith.constant 1.000000e+00 : f32
    %17 = vector.broadcast %cst_14 : f32 to vector<2x64xf32>
    %18 = arith.addf %17, %16 : vector<2x64xf32>
    %19 = arith.divf %17, %18 : vector<2x64xf32>
    %20 = vector.extract_strided_slice %13 {offsets = [0, 64], sizes = [2, 64], strides = [1, 1]} : vector<2x256xf32> to vector<2x64xf32>
    %21 = arith.negf %20 : vector<2x64xf32>
    %22 = math.exp %21 : vector<2x64xf32>
    %cst_15 = arith.constant 1.000000e+00 : f32
    %23 = vector.broadcast %cst_15 : f32 to vector<2x64xf32>
    %24 = arith.addf %23, %22 : vector<2x64xf32>
    %25 = arith.divf %23, %24 : vector<2x64xf32>
    %26 = vector.extract_strided_slice %13 {offsets = [0, 128], sizes = [2, 64], strides = [1, 1]} : vector<2x256xf32> to vector<2x64xf32>
    %27 = math.tanh %26 : vector<2x64xf32>
    %28 = vector.extract_strided_slice %13 {offsets = [0, 192], sizes = [2, 64], strides = [1, 1]} : vector<2x256xf32> to vector<2x64xf32>
    %29 = arith.negf %28 : vector<2x64xf32>
    %30 = math.exp %29 : vector<2x64xf32>
    %cst_16 = arith.constant 1.000000e+00 : f32
    %31 = vector.broadcast %cst_16 : f32 to vector<2x64xf32>
    %32 = arith.addf %31, %30 : vector<2x64xf32>
    %33 = arith.divf %31, %32 : vector<2x64xf32>
    %34 = arith.mulf %25, %8 : vector<2x64xf32>
    %35 = arith.mulf %19, %27 : vector<2x64xf32>
    %36 = arith.addf %34, %35 : vector<2x64xf32>
    %37 = math.tanh %36 : vector<2x64xf32>
    %38 = arith.mulf %33, %37 : vector<2x64xf32>
    %c0_17 = arith.constant 0 : index
    %c0_18 = arith.constant 0 : index
    %39 = vector.load %arg4[%c0_17, %c0_18] : memref<32x64xf32, #tpu.memory_space<vmem>>, vector<2x64xf32>
    tpu.vector_store %arg4[%c0_17, %c0_18], %38 {strides = array<i32>} : memref<32x64xf32, #tpu.memory_space<vmem>>, vector<2x64xf32>,
    %40 = arith.truncf %38 : vector<2x64xf32> to vector<2x64xbf16>
    %c0_19 = arith.constant 0 : index
    %c0_20 = arith.constant 0 : index
    %41 = vector.load %arg2[%c0_19, %c0_20] : memref<64x256xbf16, #tpu.memory_space<vmem>>, vector<64x256xbf16>
    %cst_21 = arith.constant dense<0.000000e+00> : vector<2x256xf32>
    %42 = tpu.matmul %40, %41, %cst_21 {dimension_numbers = #tpu.dot_dimension_numbers<[1], [0], [0], [1], [0, 0, 1, 1], [], []>} : vector<2x64xbf16>, vector<64x256xbf16>, vector<2x256xf32> -> vector<2x256xf32>
    %c2 = arith.constant 2 : index
    %c0_22 = arith.constant 0 : index
    %43 = vector.load %arg5[%c2, %c0_22] : memref<32x256xf32, #tpu.memory_space<vmem>>, vector<2x256xf32>
    %44 = arith.addf %43, %42 : vector<2x256xf32>
    %45 = vector.extract_strided_slice %44 {offsets = [0, 0], sizes = [2, 64], strides = [1, 1]} : vector<2x256xf32> to vector<2x64xf32>
    %46 = arith.negf %45 : vector<2x64xf32>
    %47 = math.exp %46 : vector<2x64xf32>
    %cst_23 = arith.constant 1.000000e+00 : f32
    %48 = vector.broadcast %cst_23 : f32 to vector<2x64xf32>
    %49 = arith.addf %48, %47 : vector<2x64xf32>
    %50 = arith.divf %48, %49 : vector<2x64xf32>
    %51 = vector.extract_strided_slice %44 {offsets = [0, 64], sizes = [2, 64], strides = [1, 1]} : vector<2x256xf32> to vector<2x64xf32>
    %52 = arith.negf %51 : vector<2x64xf32>
    %53 = math.exp %52 : vector<2x64xf32>
    %cst_24 = arith.constant 1.000000e+00 : f32
    %54 = vector.broadcast %cst_24 : f32 to vector<2x64xf32>
    %55 = arith.addf %54, %53 : vector<2x64xf32>
    %56 = arith.divf %54, %55 : vector<2x64xf32>
    %57 = vector.extract_strided_slice %44 {offsets = [0, 128], sizes = [2, 64], strides = [1, 1]} : vector<2x256xf32> to vector<2x64xf32>
    %58 = math.tanh %57 : vector<2x64xf32>
    %59 = vector.extract_strided_slice %44 {offsets = [0, 192], sizes = [2, 64], strides = [1, 1]} : vector<2x256xf32> to vector<2x64xf32>
    %60 = arith.negf %59 : vector<2x64xf32>
    %61 = math.exp %60 : vector<2x64xf32>
    %cst_25 = arith.constant 1.000000e+00 : f32
    %62 = vector.broadcast %cst_25 : f32 to vector<2x64xf32>
    %63 = arith.addf %62, %61 : vector<2x64xf32>
    %64 = arith.divf %62, %63 : vector<2x64xf32>
    %65 = arith.mulf %56, %36 : vector<2x64xf32>
    %66 = arith.mulf %50, %58 : vector<2x64xf32>
    %67 = arith.addf %65, %66 : vector<2x64xf32>
    %68 = math.tanh %67 : vector<2x64xf32>
    %69 = arith.mulf %64, %68 : vector<2x64xf32>
    %c2_26 = arith.constant 2 : index
    %c0_27 = arith.constant 0 : index
    %70 = vector.load %arg4[%c2_26, %c0_27] : memref<32x64xf32, #tpu.memory_space<vmem>>, vector<2x64xf32>
    tpu.vector_store %arg4[%c2_26, %c0_27], %69 {strides = array<i32>} : memref<32x64xf32, #tpu.memory_space<vmem>>, vector<2x64xf32>,
    %71 = arith.truncf %69 : vector<2x64xf32> to vector<2x64xbf16>
    %c0_28 = arith.constant 0 : index
    %c0_29 = arith.constant 0 : index
    %72 = vector.load %arg2[%c0_28, %c0_29] : memref<64x256xbf16, #tpu.memory_space<vmem>>, vector<64x256xbf16>
    %cst_30 = arith.constant dense<0.000000e+00> : vector<2x256xf32>
    %73 = tpu.matmul %71, %72, %cst_30 {dimension_numbers = #tpu.dot_dimension_numbers<[1], [0], [0], [1], [0, 0, 1, 1], [], []>} : vector<2x64xbf16>, vector<64x256xbf16>, vector<2x256xf32> -> vector<2x256xf32>
    %c4 = arith.constant 4 : index
    %c0_31 = arith.constant 0 : index
    %74 = vector.load %arg5[%c4, %c0_31] : memref<32x256xf32, #tpu.memory_space<vmem>>, vector<2x256xf32>
    %75 = arith.addf %74, %73 : vector<2x256xf32>
    %76 = vector.extract_strided_slice %75 {offsets = [0, 0], sizes = [2, 64], strides = [1, 1]} : vector<2x256xf32> to vector<2x64xf32>
    %77 = arith.negf %76 : vector<2x64xf32>
    %78 = math.exp %77 : vector<2x64xf32>
    %cst_32 = arith.constant 1.000000e+00 : f32
    %79 = vector.broadcast %cst_32 : f32 to vector<2x64xf32>
    %80 = arith.addf %79, %78 : vector<2x64xf32>
    %81 = arith.divf %79, %80 : vector<2x64xf32>
    %82 = vector.extract_strided_slice %75 {offsets = [0, 64], sizes = [2, 64], strides = [1, 1]} : vector<2x256xf32> to vector<2x64xf32>
    %83 = arith.negf %82 : vector<2x64xf32>
    %84 = math.exp %83 : vector<2x64xf32>
    %cst_33 = arith.constant 1.000000e+00 : f32
    %85 = vector.broadcast %cst_33 : f32 to vector<2x64xf32>
    %86 = arith.addf %85, %84 : vector<2x64xf32>
    %87 = arith.divf %85, %86 : vector<2x64xf32>
    %88 = vector.extract_strided_slice %75 {offsets = [0, 128], sizes = [2, 64], strides = [1, 1]} : vector<2x256xf32> to vector<2x64xf32>
    %89 = math.tanh %88 : vector<2x64xf32>
    %90 = vector.extract_strided_slice %75 {offsets = [0, 192], sizes = [2, 64], strides = [1, 1]} : vector<2x256xf32> to vector<2x64xf32>
    %91 = arith.negf %90 : vector<2x64xf32>
    %92 = math.exp %91 : vector<2x64xf32>
    %cst_34 = arith.constant 1.000000e+00 : f32
    %93 = vector.broadcast %cst_34 : f32 to vector<2x64xf32>
    %94 = arith.addf %93, %92 : vector<2x64xf32>
    %95 = arith.divf %93, %94 : vector<2x64xf32>
    %96 = arith.mulf %87, %67 : vector<2x64xf32>
    %97 = arith.mulf %81, %89 : vector<2x64xf32>
    %98 = arith.addf %96, %97 : vector<2x64xf32>
    %99 = math.tanh %98 : vector<2x64xf32>
    %100 = arith.mulf %95, %99 : vector<2x64xf32>
    %c4_35 = arith.constant 4 : index
    %c0_36 = arith.constant 0 : index
    %101 = vector.load %arg4[%c4_35, %c0_36] : memref<32x64xf32, #tpu.memory_space<vmem>>, vector<2x64xf32>
    tpu.vector_store %arg4[%c4_35, %c0_36], %100 {strides = array<i32>} : memref<32x64xf32, #tpu.memory_space<vmem>>, vector<2x64xf32>,
    %102 = arith.truncf %100 : vector<2x64xf32> to vector<2x64xbf16>
    %c0_37 = arith.constant 0 : index
    %c0_38 = arith.constant 0 : index
    %103 = vector.load %arg2[%c0_37, %c0_38] : memref<64x256xbf16, #tpu.memory_space<vmem>>, vector<64x256xbf16>
    %cst_39 = arith.constant dense<0.000000e+00> : vector<2x256xf32>
    %104 = tpu.matmul %102, %103, %cst_39 {dimension_numbers = #tpu.dot_dimension_numbers<[1], [0], [0], [1], [0, 0, 1, 1], [], []>} : vector<2x64xbf16>, vector<64x256xbf16>, vector<2x256xf32> -> vector<2x256xf32>
    %c6 = arith.constant 6 : index
    %c0_40 = arith.constant 0 : index
    %105 = vector.load %arg5[%c6, %c0_40] : memref<32x256xf32, #tpu.memory_space<vmem>>, vector<2x256xf32>
    %106 = arith.addf %105, %104 : vector<2x256xf32>
    %107 = vector.extract_strided_slice %106 {offsets = [0, 0], sizes = [2, 64], strides = [1, 1]} : vector<2x256xf32> to vector<2x64xf32>
    %108 = arith.negf %107 : vector<2x64xf32>
    %109 = math.exp %108 : vector<2x64xf32>
    %cst_41 = arith.constant 1.000000e+00 : f32
    %110 = vector.broadcast %cst_41 : f32 to vector<2x64xf32>
    %111 = arith.addf %110, %109 : vector<2x64xf32>
    %112 = arith.divf %110, %111 : vector<2x64xf32>
    %113 = vector.extract_strided_slice %106 {offsets = [0, 64], sizes = [2, 64], strides = [1, 1]} : vector<2x256xf32> to vector<2x64xf32>
    %114 = arith.negf %113 : vector<2x64xf32>
    %115 = math.exp %114 : vector<2x64xf32>
    %cst_42 = arith.constant 1.000000e+00 : f32
    %116 = vector.broadcast %cst_42 : f32 to vector<2x64xf32>
    %117 = arith.addf %116, %115 : vector<2x64xf32>
    %118 = arith.divf %116, %117 : vector<2x64xf32>
    %119 = vector.extract_strided_slice %106 {offsets = [0, 128], sizes = [2, 64], strides = [1, 1]} : vector<2x256xf32> to vector<2x64xf32>
    %120 = math.tanh %119 : vector<2x64xf32>
    %121 = vector.extract_strided_slice %106 {offsets = [0, 192], sizes = [2, 64], strides = [1, 1]} : vector<2x256xf32> to vector<2x64xf32>
    %122 = arith.negf %121 : vector<2x64xf32>
    %123 = math.exp %122 : vector<2x64xf32>
    %cst_43 = arith.constant 1.000000e+00 : f32
    %124 = vector.broadcast %cst_43 : f32 to vector<2x64xf32>
    %125 = arith.addf %124, %123 : vector<2x64xf32>
    %126 = arith.divf %124, %125 : vector<2x64xf32>
    %127 = arith.mulf %118, %98 : vector<2x64xf32>
    %128 = arith.mulf %112, %120 : vector<2x64xf32>
    %129 = arith.addf %127, %128 : vector<2x64xf32>
    %130 = math.tanh %129 : vector<2x64xf32>
    %131 = arith.mulf %126, %130 : vector<2x64xf32>
    %c6_44 = arith.constant 6 : index
    %c0_45 = arith.constant 0 : index
    %132 = vector.load %arg4[%c6_44, %c0_45] : memref<32x64xf32, #tpu.memory_space<vmem>>, vector<2x64xf32>
    tpu.vector_store %arg4[%c6_44, %c0_45], %131 {strides = array<i32>} : memref<32x64xf32, #tpu.memory_space<vmem>>, vector<2x64xf32>,
    %133 = arith.truncf %131 : vector<2x64xf32> to vector<2x64xbf16>
    %c0_46 = arith.constant 0 : index
    %c0_47 = arith.constant 0 : index
    %134 = vector.load %arg2[%c0_46, %c0_47] : memref<64x256xbf16, #tpu.memory_space<vmem>>, vector<64x256xbf16>
    %cst_48 = arith.constant dense<0.000000e+00> : vector<2x256xf32>
    %135 = tpu.matmul %133, %134, %cst_48 {dimension_numbers = #tpu.dot_dimension_numbers<[1], [0], [0], [1], [0, 0, 1, 1], [], []>} : vector<2x64xbf16>, vector<64x256xbf16>, vector<2x256xf32> -> vector<2x256xf32>
    %c8 = arith.constant 8 : index
    %c0_49 = arith.constant 0 : index
    %136 = vector.load %arg5[%c8, %c0_49] : memref<32x256xf32, #tpu.memory_space<vmem>>, vector<2x256xf32>
    %137 = arith.addf %136, %135 : vector<2x256xf32>
    %138 = vector.extract_strided_slice %137 {offsets = [0, 0], sizes = [2, 64], strides = [1, 1]} : vector<2x256xf32> to vector<2x64xf32>
    %139 = arith.negf %138 : vector<2x64xf32>
    %140 = math.exp %139 : vector<2x64xf32>
    %cst_50 = arith.constant 1.000000e+00 : f32
    %141 = vector.broadcast %cst_50 : f32 to vector<2x64xf32>
    %142 = arith.addf %141, %140 : vector<2x64xf32>
    %143 = arith.divf %141, %142 : vector<2x64xf32>
    %144 = vector.extract_strided_slice %137 {offsets = [0, 64], sizes = [2, 64], strides = [1, 1]} : vector<2x256xf32> to vector<2x64xf32>
    %145 = arith.negf %144 : vector<2x64xf32>
    %146 = math.exp %145 : vector<2x64xf32>
    %cst_51 = arith.constant 1.000000e+00 : f32
    %147 = vector.broadcast %cst_51 : f32 to vector<2x64xf32>
    %148 = arith.addf %147, %146 : vector<2x64xf32>
    %149 = arith.divf %147, %148 : vector<2x64xf32>
    %150 = vector.extract_strided_slice %137 {offsets = [0, 128], sizes = [2, 64], strides = [1, 1]} : vector<2x256xf32> to vector<2x64xf32>
    %151 = math.tanh %150 : vector<2x64xf32>
    %152 = vector.extract_strided_slice %137 {offsets = [0, 192], sizes = [2, 64], strides = [1, 1]} : vector<2x256xf32> to vector<2x64xf32>
    %153 = arith.negf %152 : vector<2x64xf32>
    %154 = math.exp %153 : vector<2x64xf32>
    %cst_52 = arith.constant 1.000000e+00 : f32
    %155 = vector.broadcast %cst_52 : f32 to vector<2x64xf32>
    %156 = arith.addf %155, %154 : vector<2x64xf32>
    %157 = arith.divf %155, %156 : vector<2x64xf32>
    %158 = arith.mulf %149, %129 : vector<2x64xf32>
    %159 = arith.mulf %143, %151 : vector<2x64xf32>
    %160 = arith.addf %158, %159 : vector<2x64xf32>
    %161 = math.tanh %160 : vector<2x64xf32>
    %162 = arith.mulf %157, %161 : vector<2x64xf32>
    %c8_53 = arith.constant 8 : index
    %c0_54 = arith.constant 0 : index
    %163 = vector.load %arg4[%c8_53, %c0_54] : memref<32x64xf32, #tpu.memory_space<vmem>>, vector<2x64xf32>
    tpu.vector_store %arg4[%c8_53, %c0_54], %162 {strides = array<i32>} : memref<32x64xf32, #tpu.memory_space<vmem>>, vector<2x64xf32>,
    %164 = arith.truncf %162 : vector<2x64xf32> to vector<2x64xbf16>
    %c0_55 = arith.constant 0 : index
    %c0_56 = arith.constant 0 : index
    %165 = vector.load %arg2[%c0_55, %c0_56] : memref<64x256xbf16, #tpu.memory_space<vmem>>, vector<64x256xbf16>
    %cst_57 = arith.constant dense<0.000000e+00> : vector<2x256xf32>
    %166 = tpu.matmul %164, %165, %cst_57 {dimension_numbers = #tpu.dot_dimension_numbers<[1], [0], [0], [1], [0, 0, 1, 1], [], []>} : vector<2x64xbf16>, vector<64x256xbf16>, vector<2x256xf32> -> vector<2x256xf32>
    %c10 = arith.constant 10 : index
    %c0_58 = arith.constant 0 : index
    %167 = vector.load %arg5[%c10, %c0_58] : memref<32x256xf32, #tpu.memory_space<vmem>>, vector<2x256xf32>
    %168 = arith.addf %167, %166 : vector<2x256xf32>
    %169 = vector.extract_strided_slice %168 {offsets = [0, 0], sizes = [2, 64], strides = [1, 1]} : vector<2x256xf32> to vector<2x64xf32>
    %170 = arith.negf %169 : vector<2x64xf32>
    %171 = math.exp %170 : vector<2x64xf32>
    %cst_59 = arith.constant 1.000000e+00 : f32
    %172 = vector.broadcast %cst_59 : f32 to vector<2x64xf32>
    %173 = arith.addf %172, %171 : vector<2x64xf32>
    %174 = arith.divf %172, %173 : vector<2x64xf32>
    %175 = vector.extract_strided_slice %168 {offsets = [0, 64], sizes = [2, 64], strides = [1, 1]} : vector<2x256xf32> to vector<2x64xf32>
    %176 = arith.negf %175 : vector<2x64xf32>
    %177 = math.exp %176 : vector<2x64xf32>
    %cst_60 = arith.constant 1.000000e+00 : f32
    %178 = vector.broadcast %cst_60 : f32 to vector<2x64xf32>
    %179 = arith.addf %178, %177 : vector<2x64xf32>
    %180 = arith.divf %178, %179 : vector<2x64xf32>
    %181 = vector.extract_strided_slice %168 {offsets = [0, 128], sizes = [2, 64], strides = [1, 1]} : vector<2x256xf32> to vector<2x64xf32>
    %182 = math.tanh %181 : vector<2x64xf32>
    %183 = vector.extract_strided_slice %168 {offsets = [0, 192], sizes = [2, 64], strides = [1, 1]} : vector<2x256xf32> to vector<2x64xf32>
    %184 = arith.negf %183 : vector<2x64xf32>
    %185 = math.exp %184 : vector<2x64xf32>
    %cst_61 = arith.constant 1.000000e+00 : f32
    %186 = vector.broadcast %cst_61 : f32 to vector<2x64xf32>
    %187 = arith.addf %186, %185 : vector<2x64xf32>
    %188 = arith.divf %186, %187 : vector<2x64xf32>
    %189 = arith.mulf %180, %160 : vector<2x64xf32>
    %190 = arith.mulf %174, %182 : vector<2x64xf32>
    %191 = arith.addf %189, %190 : vector<2x64xf32>
    %192 = math.tanh %191 : vector<2x64xf32>
    %193 = arith.mulf %188, %192 : vector<2x64xf32>
    %c10_62 = arith.constant 10 : index
    %c0_63 = arith.constant 0 : index
    %194 = vector.load %arg4[%c10_62, %c0_63] : memref<32x64xf32, #tpu.memory_space<vmem>>, vector<2x64xf32>
    tpu.vector_store %arg4[%c10_62, %c0_63], %193 {strides = array<i32>} : memref<32x64xf32, #tpu.memory_space<vmem>>, vector<2x64xf32>,
    %195 = arith.truncf %193 : vector<2x64xf32> to vector<2x64xbf16>
    %c0_64 = arith.constant 0 : index
    %c0_65 = arith.constant 0 : index
    %196 = vector.load %arg2[%c0_64, %c0_65] : memref<64x256xbf16, #tpu.memory_space<vmem>>, vector<64x256xbf16>
    %cst_66 = arith.constant dense<0.000000e+00> : vector<2x256xf32>
    %197 = tpu.matmul %195, %196, %cst_66 {dimension_numbers = #tpu.dot_dimension_numbers<[1], [0], [0], [1], [0, 0, 1, 1], [], []>} : vector<2x64xbf16>, vector<64x256xbf16>, vector<2x256xf32> -> vector<2x256xf32>
    %c12 = arith.constant 12 : index
    %c0_67 = arith.constant 0 : index
    %198 = vector.load %arg5[%c12, %c0_67] : memref<32x256xf32, #tpu.memory_space<vmem>>, vector<2x256xf32>
    %199 = arith.addf %198, %197 : vector<2x256xf32>
    %200 = vector.extract_strided_slice %199 {offsets = [0, 0], sizes = [2, 64], strides = [1, 1]} : vector<2x256xf32> to vector<2x64xf32>
    %201 = arith.negf %200 : vector<2x64xf32>
    %202 = math.exp %201 : vector<2x64xf32>
    %cst_68 = arith.constant 1.000000e+00 : f32
    %203 = vector.broadcast %cst_68 : f32 to vector<2x64xf32>
    %204 = arith.addf %203, %202 : vector<2x64xf32>
    %205 = arith.divf %203, %204 : vector<2x64xf32>
    %206 = vector.extract_strided_slice %199 {offsets = [0, 64], sizes = [2, 64], strides = [1, 1]} : vector<2x256xf32> to vector<2x64xf32>
    %207 = arith.negf %206 : vector<2x64xf32>
    %208 = math.exp %207 : vector<2x64xf32>
    %cst_69 = arith.constant 1.000000e+00 : f32
    %209 = vector.broadcast %cst_69 : f32 to vector<2x64xf32>
    %210 = arith.addf %209, %208 : vector<2x64xf32>
    %211 = arith.divf %209, %210 : vector<2x64xf32>
    %212 = vector.extract_strided_slice %199 {offsets = [0, 128], sizes = [2, 64], strides = [1, 1]} : vector<2x256xf32> to vector<2x64xf32>
    %213 = math.tanh %212 : vector<2x64xf32>
    %214 = vector.extract_strided_slice %199 {offsets = [0, 192], sizes = [2, 64], strides = [1, 1]} : vector<2x256xf32> to vector<2x64xf32>
    %215 = arith.negf %214 : vector<2x64xf32>
    %216 = math.exp %215 : vector<2x64xf32>
    %cst_70 = arith.constant 1.000000e+00 : f32
    %217 = vector.broadcast %cst_70 : f32 to vector<2x64xf32>
    %218 = arith.addf %217, %216 : vector<2x64xf32>
    %219 = arith.divf %217, %218 : vector<2x64xf32>
    %220 = arith.mulf %211, %191 : vector<2x64xf32>
    %221 = arith.mulf %205, %213 : vector<2x64xf32>
    %222 = arith.addf %220, %221 : vector<2x64xf32>
    %223 = math.tanh %222 : vector<2x64xf32>
    %224 = arith.mulf %219, %223 : vector<2x64xf32>
    %c12_71 = arith.constant 12 : index
    %c0_72 = arith.constant 0 : index
    %225 = vector.load %arg4[%c12_71, %c0_72] : memref<32x64xf32, #tpu.memory_space<vmem>>, vector<2x64xf32>
    tpu.vector_store %arg4[%c12_71, %c0_72], %224 {strides = array<i32>} : memref<32x64xf32, #tpu.memory_space<vmem>>, vector<2x64xf32>,
    %226 = arith.truncf %224 : vector<2x64xf32> to vector<2x64xbf16>
    %c0_73 = arith.constant 0 : index
    %c0_74 = arith.constant 0 : index
    %227 = vector.load %arg2[%c0_73, %c0_74] : memref<64x256xbf16, #tpu.memory_space<vmem>>, vector<64x256xbf16>
    %cst_75 = arith.constant dense<0.000000e+00> : vector<2x256xf32>
    %228 = tpu.matmul %226, %227, %cst_75 {dimension_numbers = #tpu.dot_dimension_numbers<[1], [0], [0], [1], [0, 0, 1, 1], [], []>} : vector<2x64xbf16>, vector<64x256xbf16>, vector<2x256xf32> -> vector<2x256xf32>
    %c14 = arith.constant 14 : index
    %c0_76 = arith.constant 0 : index
    %229 = vector.load %arg5[%c14, %c0_76] : memref<32x256xf32, #tpu.memory_space<vmem>>, vector<2x256xf32>
    %230 = arith.addf %229, %228 : vector<2x256xf32>
    %231 = vector.extract_strided_slice %230 {offsets = [0, 0], sizes = [2, 64], strides = [1, 1]} : vector<2x256xf32> to vector<2x64xf32>
    %232 = arith.negf %231 : vector<2x64xf32>
    %233 = math.exp %232 : vector<2x64xf32>
    %cst_77 = arith.constant 1.000000e+00 : f32
    %234 = vector.broadcast %cst_77 : f32 to vector<2x64xf32>
    %235 = arith.addf %234, %233 : vector<2x64xf32>
    %236 = arith.divf %234, %235 : vector<2x64xf32>
    %237 = vector.extract_strided_slice %230 {offsets = [0, 64], sizes = [2, 64], strides = [1, 1]} : vector<2x256xf32> to vector<2x64xf32>
    %238 = arith.negf %237 : vector<2x64xf32>
    %239 = math.exp %238 : vector<2x64xf32>
    %cst_78 = arith.constant 1.000000e+00 : f32
    %240 = vector.broadcast %cst_78 : f32 to vector<2x64xf32>
    %241 = arith.addf %240, %239 : vector<2x64xf32>
    %242 = arith.divf %240, %241 : vector<2x64xf32>
    %243 = vector.extract_strided_slice %230 {offsets = [0, 128], sizes = [2, 64], strides = [1, 1]} : vector<2x256xf32> to vector<2x64xf32>
    %244 = math.tanh %243 : vector<2x64xf32>
    %245 = vector.extract_strided_slice %230 {offsets = [0, 192], sizes = [2, 64], strides = [1, 1]} : vector<2x256xf32> to vector<2x64xf32>
    %246 = arith.negf %245 : vector<2x64xf32>
    %247 = math.exp %246 : vector<2x64xf32>
    %cst_79 = arith.constant 1.000000e+00 : f32
    %248 = vector.broadcast %cst_79 : f32 to vector<2x64xf32>
    %249 = arith.addf %248, %247 : vector<2x64xf32>
    %250 = arith.divf %248, %249 : vector<2x64xf32>
    %251 = arith.mulf %242, %222 : vector<2x64xf32>
    %252 = arith.mulf %236, %244 : vector<2x64xf32>
    %253 = arith.addf %251, %252 : vector<2x64xf32>
    %254 = math.tanh %253 : vector<2x64xf32>
    %255 = arith.mulf %250, %254 : vector<2x64xf32>
    %c14_80 = arith.constant 14 : index
    %c0_81 = arith.constant 0 : index
    %256 = vector.load %arg4[%c14_80, %c0_81] : memref<32x64xf32, #tpu.memory_space<vmem>>, vector<2x64xf32>
    tpu.vector_store %arg4[%c14_80, %c0_81], %255 {strides = array<i32>} : memref<32x64xf32, #tpu.memory_space<vmem>>, vector<2x64xf32>,
    %257 = arith.truncf %255 : vector<2x64xf32> to vector<2x64xbf16>
    %c0_82 = arith.constant 0 : index
    %c0_83 = arith.constant 0 : index
    %258 = vector.load %arg2[%c0_82, %c0_83] : memref<64x256xbf16, #tpu.memory_space<vmem>>, vector<64x256xbf16>
    %cst_84 = arith.constant dense<0.000000e+00> : vector<2x256xf32>
    %259 = tpu.matmul %257, %258, %cst_84 {dimension_numbers = #tpu.dot_dimension_numbers<[1], [0], [0], [1], [0, 0, 1, 1], [], []>} : vector<2x64xbf16>, vector<64x256xbf16>, vector<2x256xf32> -> vector<2x256xf32>
    %c16 = arith.constant 16 : index
    %c0_85 = arith.constant 0 : index
    %260 = vector.load %arg5[%c16, %c0_85] : memref<32x256xf32, #tpu.memory_space<vmem>>, vector<2x256xf32>
    %261 = arith.addf %260, %259 : vector<2x256xf32>
    %262 = vector.extract_strided_slice %261 {offsets = [0, 0], sizes = [2, 64], strides = [1, 1]} : vector<2x256xf32> to vector<2x64xf32>
    %263 = arith.negf %262 : vector<2x64xf32>
    %264 = math.exp %263 : vector<2x64xf32>
    %cst_86 = arith.constant 1.000000e+00 : f32
    %265 = vector.broadcast %cst_86 : f32 to vector<2x64xf32>
    %266 = arith.addf %265, %264 : vector<2x64xf32>
    %267 = arith.divf %265, %266 : vector<2x64xf32>
    %268 = vector.extract_strided_slice %261 {offsets = [0, 64], sizes = [2, 64], strides = [1, 1]} : vector<2x256xf32> to vector<2x64xf32>
    %269 = arith.negf %268 : vector<2x64xf32>
    %270 = math.exp %269 : vector<2x64xf32>
    %cst_87 = arith.constant 1.000000e+00 : f32
    %271 = vector.broadcast %cst_87 : f32 to vector<2x64xf32>
    %272 = arith.addf %271, %270 : vector<2x64xf32>
    %273 = arith.divf %271, %272 : vector<2x64xf32>
    %274 = vector.extract_strided_slice %261 {offsets = [0, 128], sizes = [2, 64], strides = [1, 1]} : vector<2x256xf32> to vector<2x64xf32>
    %275 = math.tanh %274 : vector<2x64xf32>
    %276 = vector.extract_strided_slice %261 {offsets = [0, 192], sizes = [2, 64], strides = [1, 1]} : vector<2x256xf32> to vector<2x64xf32>
    %277 = arith.negf %276 : vector<2x64xf32>
    %278 = math.exp %277 : vector<2x64xf32>
    %cst_88 = arith.constant 1.000000e+00 : f32
    %279 = vector.broadcast %cst_88 : f32 to vector<2x64xf32>
    %280 = arith.addf %279, %278 : vector<2x64xf32>
    %281 = arith.divf %279, %280 : vector<2x64xf32>
    %282 = arith.mulf %273, %253 : vector<2x64xf32>
    %283 = arith.mulf %267, %275 : vector<2x64xf32>
    %284 = arith.addf %282, %283 : vector<2x64xf32>
    %285 = math.tanh %284 : vector<2x64xf32>
    %286 = arith.mulf %281, %285 : vector<2x64xf32>
    %c16_89 = arith.constant 16 : index
    %c0_90 = arith.constant 0 : index
    %287 = vector.load %arg4[%c16_89, %c0_90] : memref<32x64xf32, #tpu.memory_space<vmem>>, vector<2x64xf32>
    tpu.vector_store %arg4[%c16_89, %c0_90], %286 {strides = array<i32>} : memref<32x64xf32, #tpu.memory_space<vmem>>, vector<2x64xf32>,
    %288 = arith.truncf %286 : vector<2x64xf32> to vector<2x64xbf16>
    %c0_91 = arith.constant 0 : index
    %c0_92 = arith.constant 0 : index
    %289 = vector.load %arg2[%c0_91, %c0_92] : memref<64x256xbf16, #tpu.memory_space<vmem>>, vector<64x256xbf16>
    %cst_93 = arith.constant dense<0.000000e+00> : vector<2x256xf32>
    %290 = tpu.matmul %288, %289, %cst_93 {dimension_numbers = #tpu.dot_dimension_numbers<[1], [0], [0], [1], [0, 0, 1, 1], [], []>} : vector<2x64xbf16>, vector<64x256xbf16>, vector<2x256xf32> -> vector<2x256xf32>
    %c18 = arith.constant 18 : index
    %c0_94 = arith.constant 0 : index
    %291 = vector.load %arg5[%c18, %c0_94] : memref<32x256xf32, #tpu.memory_space<vmem>>, vector<2x256xf32>
    %292 = arith.addf %291, %290 : vector<2x256xf32>
    %293 = vector.extract_strided_slice %292 {offsets = [0, 0], sizes = [2, 64], strides = [1, 1]} : vector<2x256xf32> to vector<2x64xf32>
    %294 = arith.negf %293 : vector<2x64xf32>
    %295 = math.exp %294 : vector<2x64xf32>
    %cst_95 = arith.constant 1.000000e+00 : f32
    %296 = vector.broadcast %cst_95 : f32 to vector<2x64xf32>
    %297 = arith.addf %296, %295 : vector<2x64xf32>
    %298 = arith.divf %296, %297 : vector<2x64xf32>
    %299 = vector.extract_strided_slice %292 {offsets = [0, 64], sizes = [2, 64], strides = [1, 1]} : vector<2x256xf32> to vector<2x64xf32>
    %300 = arith.negf %299 : vector<2x64xf32>
    %301 = math.exp %300 : vector<2x64xf32>
    %cst_96 = arith.constant 1.000000e+00 : f32
    %302 = vector.broadcast %cst_96 : f32 to vector<2x64xf32>
    %303 = arith.addf %302, %301 : vector<2x64xf32>
    %304 = arith.divf %302, %303 : vector<2x64xf32>
    %305 = vector.extract_strided_slice %292 {offsets = [0, 128], sizes = [2, 64], strides = [1, 1]} : vector<2x256xf32> to vector<2x64xf32>
    %306 = math.tanh %305 : vector<2x64xf32>
    %307 = vector.extract_strided_slice %292 {offsets = [0, 192], sizes = [2, 64], strides = [1, 1]} : vector<2x256xf32> to vector<2x64xf32>
    %308 = arith.negf %307 : vector<2x64xf32>
    %309 = math.exp %308 : vector<2x64xf32>
    %cst_97 = arith.constant 1.000000e+00 : f32
    %310 = vector.broadcast %cst_97 : f32 to vector<2x64xf32>
    %311 = arith.addf %310, %309 : vector<2x64xf32>
    %312 = arith.divf %310, %311 : vector<2x64xf32>
    %313 = arith.mulf %304, %284 : vector<2x64xf32>
    %314 = arith.mulf %298, %306 : vector<2x64xf32>
    %315 = arith.addf %313, %314 : vector<2x64xf32>
    %316 = math.tanh %315 : vector<2x64xf32>
    %317 = arith.mulf %312, %316 : vector<2x64xf32>
    %c18_98 = arith.constant 18 : index
    %c0_99 = arith.constant 0 : index
    %318 = vector.load %arg4[%c18_98, %c0_99] : memref<32x64xf32, #tpu.memory_space<vmem>>, vector<2x64xf32>
    tpu.vector_store %arg4[%c18_98, %c0_99], %317 {strides = array<i32>} : memref<32x64xf32, #tpu.memory_space<vmem>>, vector<2x64xf32>,
    %319 = arith.truncf %317 : vector<2x64xf32> to vector<2x64xbf16>
    %c0_100 = arith.constant 0 : index
    %c0_101 = arith.constant 0 : index
    %320 = vector.load %arg2[%c0_100, %c0_101] : memref<64x256xbf16, #tpu.memory_space<vmem>>, vector<64x256xbf16>
    %cst_102 = arith.constant dense<0.000000e+00> : vector<2x256xf32>
    %321 = tpu.matmul %319, %320, %cst_102 {dimension_numbers = #tpu.dot_dimension_numbers<[1], [0], [0], [1], [0, 0, 1, 1], [], []>} : vector<2x64xbf16>, vector<64x256xbf16>, vector<2x256xf32> -> vector<2x256xf32>
    %c20 = arith.constant 20 : index
    %c0_103 = arith.constant 0 : index
    %322 = vector.load %arg5[%c20, %c0_103] : memref<32x256xf32, #tpu.memory_space<vmem>>, vector<2x256xf32>
    %323 = arith.addf %322, %321 : vector<2x256xf32>
    %324 = vector.extract_strided_slice %323 {offsets = [0, 0], sizes = [2, 64], strides = [1, 1]} : vector<2x256xf32> to vector<2x64xf32>
    %325 = arith.negf %324 : vector<2x64xf32>
    %326 = math.exp %325 : vector<2x64xf32>
    %cst_104 = arith.constant 1.000000e+00 : f32
    %327 = vector.broadcast %cst_104 : f32 to vector<2x64xf32>
    %328 = arith.addf %327, %326 : vector<2x64xf32>
    %329 = arith.divf %327, %328 : vector<2x64xf32>
    %330 = vector.extract_strided_slice %323 {offsets = [0, 64], sizes = [2, 64], strides = [1, 1]} : vector<2x256xf32> to vector<2x64xf32>
    %331 = arith.negf %330 : vector<2x64xf32>
    %332 = math.exp %331 : vector<2x64xf32>
    %cst_105 = arith.constant 1.000000e+00 : f32
    %333 = vector.broadcast %cst_105 : f32 to vector<2x64xf32>
    %334 = arith.addf %333, %332 : vector<2x64xf32>
    %335 = arith.divf %333, %334 : vector<2x64xf32>
    %336 = vector.extract_strided_slice %323 {offsets = [0, 128], sizes = [2, 64], strides = [1, 1]} : vector<2x256xf32> to vector<2x64xf32>
    %337 = math.tanh %336 : vector<2x64xf32>
    %338 = vector.extract_strided_slice %323 {offsets = [0, 192], sizes = [2, 64], strides = [1, 1]} : vector<2x256xf32> to vector<2x64xf32>
    %339 = arith.negf %338 : vector<2x64xf32>
    %340 = math.exp %339 : vector<2x64xf32>
    %cst_106 = arith.constant 1.000000e+00 : f32
    %341 = vector.broadcast %cst_106 : f32 to vector<2x64xf32>
    %342 = arith.addf %341, %340 : vector<2x64xf32>
    %343 = arith.divf %341, %342 : vector<2x64xf32>
    %344 = arith.mulf %335, %315 : vector<2x64xf32>
    %345 = arith.mulf %329, %337 : vector<2x64xf32>
    %346 = arith.addf %344, %345 : vector<2x64xf32>
    %347 = math.tanh %346 : vector<2x64xf32>
    %348 = arith.mulf %343, %347 : vector<2x64xf32>
    %c20_107 = arith.constant 20 : index
    %c0_108 = arith.constant 0 : index
    %349 = vector.load %arg4[%c20_107, %c0_108] : memref<32x64xf32, #tpu.memory_space<vmem>>, vector<2x64xf32>
    tpu.vector_store %arg4[%c20_107, %c0_108], %348 {strides = array<i32>} : memref<32x64xf32, #tpu.memory_space<vmem>>, vector<2x64xf32>,
    %350 = arith.truncf %348 : vector<2x64xf32> to vector<2x64xbf16>
    %c0_109 = arith.constant 0 : index
    %c0_110 = arith.constant 0 : index
    %351 = vector.load %arg2[%c0_109, %c0_110] : memref<64x256xbf16, #tpu.memory_space<vmem>>, vector<64x256xbf16>
    %cst_111 = arith.constant dense<0.000000e+00> : vector<2x256xf32>
    %352 = tpu.matmul %350, %351, %cst_111 {dimension_numbers = #tpu.dot_dimension_numbers<[1], [0], [0], [1], [0, 0, 1, 1], [], []>} : vector<2x64xbf16>, vector<64x256xbf16>, vector<2x256xf32> -> vector<2x256xf32>
    %c22 = arith.constant 22 : index
    %c0_112 = arith.constant 0 : index
    %353 = vector.load %arg5[%c22, %c0_112] : memref<32x256xf32, #tpu.memory_space<vmem>>, vector<2x256xf32>
    %354 = arith.addf %353, %352 : vector<2x256xf32>
    %355 = vector.extract_strided_slice %354 {offsets = [0, 0], sizes = [2, 64], strides = [1, 1]} : vector<2x256xf32> to vector<2x64xf32>
    %356 = arith.negf %355 : vector<2x64xf32>
    %357 = math.exp %356 : vector<2x64xf32>
    %cst_113 = arith.constant 1.000000e+00 : f32
    %358 = vector.broadcast %cst_113 : f32 to vector<2x64xf32>
    %359 = arith.addf %358, %357 : vector<2x64xf32>
    %360 = arith.divf %358, %359 : vector<2x64xf32>
    %361 = vector.extract_strided_slice %354 {offsets = [0, 64], sizes = [2, 64], strides = [1, 1]} : vector<2x256xf32> to vector<2x64xf32>
    %362 = arith.negf %361 : vector<2x64xf32>
    %363 = math.exp %362 : vector<2x64xf32>
    %cst_114 = arith.constant 1.000000e+00 : f32
    %364 = vector.broadcast %cst_114 : f32 to vector<2x64xf32>
    %365 = arith.addf %364, %363 : vector<2x64xf32>
    %366 = arith.divf %364, %365 : vector<2x64xf32>
    %367 = vector.extract_strided_slice %354 {offsets = [0, 128], sizes = [2, 64], strides = [1, 1]} : vector<2x256xf32> to vector<2x64xf32>
    %368 = math.tanh %367 : vector<2x64xf32>
    %369 = vector.extract_strided_slice %354 {offsets = [0, 192], sizes = [2, 64], strides = [1, 1]} : vector<2x256xf32> to vector<2x64xf32>
    %370 = arith.negf %369 : vector<2x64xf32>
    %371 = math.exp %370 : vector<2x64xf32>
    %cst_115 = arith.constant 1.000000e+00 : f32
    %372 = vector.broadcast %cst_115 : f32 to vector<2x64xf32>
    %373 = arith.addf %372, %371 : vector<2x64xf32>
    %374 = arith.divf %372, %373 : vector<2x64xf32>
    %375 = arith.mulf %366, %346 : vector<2x64xf32>
    %376 = arith.mulf %360, %368 : vector<2x64xf32>
    %377 = arith.addf %375, %376 : vector<2x64xf32>
    %378 = math.tanh %377 : vector<2x64xf32>
    %379 = arith.mulf %374, %378 : vector<2x64xf32>
    %c22_116 = arith.constant 22 : index
    %c0_117 = arith.constant 0 : index
    %380 = vector.load %arg4[%c22_116, %c0_117] : memref<32x64xf32, #tpu.memory_space<vmem>>, vector<2x64xf32>
    tpu.vector_store %arg4[%c22_116, %c0_117], %379 {strides = array<i32>} : memref<32x64xf32, #tpu.memory_space<vmem>>, vector<2x64xf32>,
    %381 = arith.truncf %379 : vector<2x64xf32> to vector<2x64xbf16>
    %c0_118 = arith.constant 0 : index
    %c0_119 = arith.constant 0 : index
    %382 = vector.load %arg2[%c0_118, %c0_119] : memref<64x256xbf16, #tpu.memory_space<vmem>>, vector<64x256xbf16>
    %cst_120 = arith.constant dense<0.000000e+00> : vector<2x256xf32>
    %383 = tpu.matmul %381, %382, %cst_120 {dimension_numbers = #tpu.dot_dimension_numbers<[1], [0], [0], [1], [0, 0, 1, 1], [], []>} : vector<2x64xbf16>, vector<64x256xbf16>, vector<2x256xf32> -> vector<2x256xf32>
    %c24 = arith.constant 24 : index
    %c0_121 = arith.constant 0 : index
    %384 = vector.load %arg5[%c24, %c0_121] : memref<32x256xf32, #tpu.memory_space<vmem>>, vector<2x256xf32>
    %385 = arith.addf %384, %383 : vector<2x256xf32>
    %386 = vector.extract_strided_slice %385 {offsets = [0, 0], sizes = [2, 64], strides = [1, 1]} : vector<2x256xf32> to vector<2x64xf32>
    %387 = arith.negf %386 : vector<2x64xf32>
    %388 = math.exp %387 : vector<2x64xf32>
    %cst_122 = arith.constant 1.000000e+00 : f32
    %389 = vector.broadcast %cst_122 : f32 to vector<2x64xf32>
    %390 = arith.addf %389, %388 : vector<2x64xf32>
    %391 = arith.divf %389, %390 : vector<2x64xf32>
    %392 = vector.extract_strided_slice %385 {offsets = [0, 64], sizes = [2, 64], strides = [1, 1]} : vector<2x256xf32> to vector<2x64xf32>
    %393 = arith.negf %392 : vector<2x64xf32>
    %394 = math.exp %393 : vector<2x64xf32>
    %cst_123 = arith.constant 1.000000e+00 : f32
    %395 = vector.broadcast %cst_123 : f32 to vector<2x64xf32>
    %396 = arith.addf %395, %394 : vector<2x64xf32>
    %397 = arith.divf %395, %396 : vector<2x64xf32>
    %398 = vector.extract_strided_slice %385 {offsets = [0, 128], sizes = [2, 64], strides = [1, 1]} : vector<2x256xf32> to vector<2x64xf32>
    %399 = math.tanh %398 : vector<2x64xf32>
    %400 = vector.extract_strided_slice %385 {offsets = [0, 192], sizes = [2, 64], strides = [1, 1]} : vector<2x256xf32> to vector<2x64xf32>
    %401 = arith.negf %400 : vector<2x64xf32>
    %402 = math.exp %401 : vector<2x64xf32>
    %cst_124 = arith.constant 1.000000e+00 : f32
    %403 = vector.broadcast %cst_124 : f32 to vector<2x64xf32>
    %404 = arith.addf %403, %402 : vector<2x64xf32>
    %405 = arith.divf %403, %404 : vector<2x64xf32>
    %406 = arith.mulf %397, %377 : vector<2x64xf32>
    %407 = arith.mulf %391, %399 : vector<2x64xf32>
    %408 = arith.addf %406, %407 : vector<2x64xf32>
    %409 = math.tanh %408 : vector<2x64xf32>
    %410 = arith.mulf %405, %409 : vector<2x64xf32>
    %c24_125 = arith.constant 24 : index
    %c0_126 = arith.constant 0 : index
    %411 = vector.load %arg4[%c24_125, %c0_126] : memref<32x64xf32, #tpu.memory_space<vmem>>, vector<2x64xf32>
    tpu.vector_store %arg4[%c24_125, %c0_126], %410 {strides = array<i32>} : memref<32x64xf32, #tpu.memory_space<vmem>>, vector<2x64xf32>,
    %412 = arith.truncf %410 : vector<2x64xf32> to vector<2x64xbf16>
    %c0_127 = arith.constant 0 : index
    %c0_128 = arith.constant 0 : index
    %413 = vector.load %arg2[%c0_127, %c0_128] : memref<64x256xbf16, #tpu.memory_space<vmem>>, vector<64x256xbf16>
    %cst_129 = arith.constant dense<0.000000e+00> : vector<2x256xf32>
    %414 = tpu.matmul %412, %413, %cst_129 {dimension_numbers = #tpu.dot_dimension_numbers<[1], [0], [0], [1], [0, 0, 1, 1], [], []>} : vector<2x64xbf16>, vector<64x256xbf16>, vector<2x256xf32> -> vector<2x256xf32>
    %c26 = arith.constant 26 : index
    %c0_130 = arith.constant 0 : index
    %415 = vector.load %arg5[%c26, %c0_130] : memref<32x256xf32, #tpu.memory_space<vmem>>, vector<2x256xf32>
    %416 = arith.addf %415, %414 : vector<2x256xf32>
    %417 = vector.extract_strided_slice %416 {offsets = [0, 0], sizes = [2, 64], strides = [1, 1]} : vector<2x256xf32> to vector<2x64xf32>
    %418 = arith.negf %417 : vector<2x64xf32>
    %419 = math.exp %418 : vector<2x64xf32>
    %cst_131 = arith.constant 1.000000e+00 : f32
    %420 = vector.broadcast %cst_131 : f32 to vector<2x64xf32>
    %421 = arith.addf %420, %419 : vector<2x64xf32>
    %422 = arith.divf %420, %421 : vector<2x64xf32>
    %423 = vector.extract_strided_slice %416 {offsets = [0, 64], sizes = [2, 64], strides = [1, 1]} : vector<2x256xf32> to vector<2x64xf32>
    %424 = arith.negf %423 : vector<2x64xf32>
    %425 = math.exp %424 : vector<2x64xf32>
    %cst_132 = arith.constant 1.000000e+00 : f32
    %426 = vector.broadcast %cst_132 : f32 to vector<2x64xf32>
    %427 = arith.addf %426, %425 : vector<2x64xf32>
    %428 = arith.divf %426, %427 : vector<2x64xf32>
    %429 = vector.extract_strided_slice %416 {offsets = [0, 128], sizes = [2, 64], strides = [1, 1]} : vector<2x256xf32> to vector<2x64xf32>
    %430 = math.tanh %429 : vector<2x64xf32>
    %431 = vector.extract_strided_slice %416 {offsets = [0, 192], sizes = [2, 64], strides = [1, 1]} : vector<2x256xf32> to vector<2x64xf32>
    %432 = arith.negf %431 : vector<2x64xf32>
    %433 = math.exp %432 : vector<2x64xf32>
    %cst_133 = arith.constant 1.000000e+00 : f32
    %434 = vector.broadcast %cst_133 : f32 to vector<2x64xf32>
    %435 = arith.addf %434, %433 : vector<2x64xf32>
    %436 = arith.divf %434, %435 : vector<2x64xf32>
    %437 = arith.mulf %428, %408 : vector<2x64xf32>
    %438 = arith.mulf %422, %430 : vector<2x64xf32>
    %439 = arith.addf %437, %438 : vector<2x64xf32>
    %440 = math.tanh %439 : vector<2x64xf32>
    %441 = arith.mulf %436, %440 : vector<2x64xf32>
    %c26_134 = arith.constant 26 : index
    %c0_135 = arith.constant 0 : index
    %442 = vector.load %arg4[%c26_134, %c0_135] : memref<32x64xf32, #tpu.memory_space<vmem>>, vector<2x64xf32>
    tpu.vector_store %arg4[%c26_134, %c0_135], %441 {strides = array<i32>} : memref<32x64xf32, #tpu.memory_space<vmem>>, vector<2x64xf32>,
    %443 = arith.truncf %441 : vector<2x64xf32> to vector<2x64xbf16>
    %c0_136 = arith.constant 0 : index
    %c0_137 = arith.constant 0 : index
    %444 = vector.load %arg2[%c0_136, %c0_137] : memref<64x256xbf16, #tpu.memory_space<vmem>>, vector<64x256xbf16>
    %cst_138 = arith.constant dense<0.000000e+00> : vector<2x256xf32>
    %445 = tpu.matmul %443, %444, %cst_138 {dimension_numbers = #tpu.dot_dimension_numbers<[1], [0], [0], [1], [0, 0, 1, 1], [], []>} : vector<2x64xbf16>, vector<64x256xbf16>, vector<2x256xf32> -> vector<2x256xf32>
    %c28 = arith.constant 28 : index
    %c0_139 = arith.constant 0 : index
    %446 = vector.load %arg5[%c28, %c0_139] : memref<32x256xf32, #tpu.memory_space<vmem>>, vector<2x256xf32>
    %447 = arith.addf %446, %445 : vector<2x256xf32>
    %448 = vector.extract_strided_slice %447 {offsets = [0, 0], sizes = [2, 64], strides = [1, 1]} : vector<2x256xf32> to vector<2x64xf32>
    %449 = arith.negf %448 : vector<2x64xf32>
    %450 = math.exp %449 : vector<2x64xf32>
    %cst_140 = arith.constant 1.000000e+00 : f32
    %451 = vector.broadcast %cst_140 : f32 to vector<2x64xf32>
    %452 = arith.addf %451, %450 : vector<2x64xf32>
    %453 = arith.divf %451, %452 : vector<2x64xf32>
    %454 = vector.extract_strided_slice %447 {offsets = [0, 64], sizes = [2, 64], strides = [1, 1]} : vector<2x256xf32> to vector<2x64xf32>
    %455 = arith.negf %454 : vector<2x64xf32>
    %456 = math.exp %455 : vector<2x64xf32>
    %cst_141 = arith.constant 1.000000e+00 : f32
    %457 = vector.broadcast %cst_141 : f32 to vector<2x64xf32>
    %458 = arith.addf %457, %456 : vector<2x64xf32>
    %459 = arith.divf %457, %458 : vector<2x64xf32>
    %460 = vector.extract_strided_slice %447 {offsets = [0, 128], sizes = [2, 64], strides = [1, 1]} : vector<2x256xf32> to vector<2x64xf32>
    %461 = math.tanh %460 : vector<2x64xf32>
    %462 = vector.extract_strided_slice %447 {offsets = [0, 192], sizes = [2, 64], strides = [1, 1]} : vector<2x256xf32> to vector<2x64xf32>
    %463 = arith.negf %462 : vector<2x64xf32>
    %464 = math.exp %463 : vector<2x64xf32>
    %cst_142 = arith.constant 1.000000e+00 : f32
    %465 = vector.broadcast %cst_142 : f32 to vector<2x64xf32>
    %466 = arith.addf %465, %464 : vector<2x64xf32>
    %467 = arith.divf %465, %466 : vector<2x64xf32>
    %468 = arith.mulf %459, %439 : vector<2x64xf32>
    %469 = arith.mulf %453, %461 : vector<2x64xf32>
    %470 = arith.addf %468, %469 : vector<2x64xf32>
    %471 = math.tanh %470 : vector<2x64xf32>
    %472 = arith.mulf %467, %471 : vector<2x64xf32>
    %c28_143 = arith.constant 28 : index
    %c0_144 = arith.constant 0 : index
    %473 = vector.load %arg4[%c28_143, %c0_144] : memref<32x64xf32, #tpu.memory_space<vmem>>, vector<2x64xf32>
    tpu.vector_store %arg4[%c28_143, %c0_144], %472 {strides = array<i32>} : memref<32x64xf32, #tpu.memory_space<vmem>>, vector<2x64xf32>,
    %474 = arith.truncf %472 : vector<2x64xf32> to vector<2x64xbf16>
    %c0_145 = arith.constant 0 : index
    %c0_146 = arith.constant 0 : index
    %475 = vector.load %arg2[%c0_145, %c0_146] : memref<64x256xbf16, #tpu.memory_space<vmem>>, vector<64x256xbf16>
    %cst_147 = arith.constant dense<0.000000e+00> : vector<2x256xf32>
    %476 = tpu.matmul %474, %475, %cst_147 {dimension_numbers = #tpu.dot_dimension_numbers<[1], [0], [0], [1], [0, 0, 1, 1], [], []>} : vector<2x64xbf16>, vector<64x256xbf16>, vector<2x256xf32> -> vector<2x256xf32>
    %c30 = arith.constant 30 : index
    %c0_148 = arith.constant 0 : index
    %477 = vector.load %arg5[%c30, %c0_148] : memref<32x256xf32, #tpu.memory_space<vmem>>, vector<2x256xf32>
    %478 = arith.addf %477, %476 : vector<2x256xf32>
    %479 = vector.extract_strided_slice %478 {offsets = [0, 0], sizes = [2, 64], strides = [1, 1]} : vector<2x256xf32> to vector<2x64xf32>
    %480 = arith.negf %479 : vector<2x64xf32>
    %481 = math.exp %480 : vector<2x64xf32>
    %cst_149 = arith.constant 1.000000e+00 : f32
    %482 = vector.broadcast %cst_149 : f32 to vector<2x64xf32>
    %483 = arith.addf %482, %481 : vector<2x64xf32>
    %484 = arith.divf %482, %483 : vector<2x64xf32>
    %485 = vector.extract_strided_slice %478 {offsets = [0, 64], sizes = [2, 64], strides = [1, 1]} : vector<2x256xf32> to vector<2x64xf32>
    %486 = arith.negf %485 : vector<2x64xf32>
    %487 = math.exp %486 : vector<2x64xf32>
    %cst_150 = arith.constant 1.000000e+00 : f32
    %488 = vector.broadcast %cst_150 : f32 to vector<2x64xf32>
    %489 = arith.addf %488, %487 : vector<2x64xf32>
    %490 = arith.divf %488, %489 : vector<2x64xf32>
    %491 = vector.extract_strided_slice %478 {offsets = [0, 128], sizes = [2, 64], strides = [1, 1]} : vector<2x256xf32> to vector<2x64xf32>
    %492 = math.tanh %491 : vector<2x64xf32>
    %493 = vector.extract_strided_slice %478 {offsets = [0, 192], sizes = [2, 64], strides = [1, 1]} : vector<2x256xf32> to vector<2x64xf32>
    %494 = arith.negf %493 : vector<2x64xf32>
    %495 = math.exp %494 : vector<2x64xf32>
    %cst_151 = arith.constant 1.000000e+00 : f32
    %496 = vector.broadcast %cst_151 : f32 to vector<2x64xf32>
    %497 = arith.addf %496, %495 : vector<2x64xf32>
    %498 = arith.divf %496, %497 : vector<2x64xf32>
    %499 = arith.mulf %490, %470 : vector<2x64xf32>
    %500 = arith.mulf %484, %492 : vector<2x64xf32>
    %501 = arith.addf %499, %500 : vector<2x64xf32>
    %502 = math.tanh %501 : vector<2x64xf32>
    %503 = arith.mulf %498, %502 : vector<2x64xf32>
    %c30_152 = arith.constant 30 : index
    %c0_153 = arith.constant 0 : index
    %504 = vector.load %arg4[%c30_152, %c0_153] : memref<32x64xf32, #tpu.memory_space<vmem>>, vector<2x64xf32>
    tpu.vector_store %arg4[%c30_152, %c0_153], %503 {strides = array<i32>} : memref<32x64xf32, #tpu.memory_space<vmem>>, vector<2x64xf32>,
    return
  }
}

</mosaic_0001>

<llo_original>
// kernel: row_encoder_forward.1
$region0: #{row_encoder_forward.1}
  #allocation0 [shape = 'u32[]', space=smem, size = 0x4, offset = 0x4, fixed_abs, tag = 'smem constant byte address 0x4 - core index']
  #allocation1 [shape = 'u32[72,128]{1,0:T(1,128)}', space=vmem, size = 0x9000, scoped, tag = 'internal scratch']
  #allocation2 [shape = 'f32[32,256]{1,0:T(8,128)}', space=vmem, size = 0x8000, scoped, tag = 'scratch operand']
  %s0 = inlined_call_operand.vmem [shape: f32[32,128], index: 0, kind: input, shape index: {}]
  %s1 = inlined_call_operand.vmem [shape: f32[128,256], index: 1, kind: input, shape index: {}]
  %s2 = inlined_call_operand.vmem [shape: bf16[64,256], index: 2, kind: input, shape index: {}]
  %s3 = inlined_call_operand.vmem [shape: f32[1,256], index: 3, kind: input, shape index: {}]
  %s4 = inlined_call_operand.vmem [shape: f32[32,64], index: 4, kind: output, shape index: {}]
  %s5 = sld [smem:[#allocation0]]
  $region26: #{row_encoder_forward.1} parent=0
    _
  %s7 = ssub.s32 1, %s5
  %s8 = scalar_select 0, %s7, %s5
  // Predicated region
  $region2: #{row_encoder_forward.1} parent=0 // pred_check
    _
  $region3: #{row_encoder_forward.1} parent=0 // pred_check_branch
    %10 = sbr.rel (0) target = $region5
  $region4: #{row_encoder_forward.1} parent=0 // pred_region
    _
  $region5: #{row_encoder_forward.1} parent=0 // pred_fallthru
    _
  // Predicated region
  $region6: #{row_encoder_forward.1} parent=0 // pred_check
    _
  $region7: #{row_encoder_forward.1} parent=0 // pred_check_branch
    %12 = sbr.rel (0) target = $region9
  $region8: #{row_encoder_forward.1} parent=0 // pred_region
    _
  $region9: #{row_encoder_forward.1} parent=0 // pred_fallthru
    _
  // Predicated region
  $region10: #{row_encoder_forward.1} parent=0 // pred_check
    _
  $region11: #{row_encoder_forward.1} parent=0 // pred_check_branch
    %14 = sbr.rel (0) target = $region13
  $region12: #{row_encoder_forward.1} parent=0 // pred_region
    _
  $region13: #{row_encoder_forward.1} parent=0 // pred_fallthru
    _
  // Predicated region
  $region14: #{row_encoder_forward.1} parent=0 // pred_check
    _
  $region15: #{row_encoder_forward.1} parent=0 // pred_check_branch
    %16 = sbr.rel (0) target = $region17
  $region16: #{row_encoder_forward.1} parent=0 // pred_region
    _
  $region17: #{row_encoder_forward.1} parent=0 // pred_fallthru
    _
  %v18 = vld [vmem:[%s0] sm:$0xff]
  %v19 = vld [vmem:[%s0 + $0x8] sm:$0xff]
  %v20 = vld [vmem:[%s0 + $0x10] sm:$0xff]
  %v21 = vld [vmem:[%s0 + $0x18] sm:$0xff]
  %v22 = vld [vmem:[%s1] sm:$0xff]
  %v23 = vld [vmem:[%s1 + $0x8] sm:$0xff]
  %v24 = vld [vmem:[%s1 + $0x10] sm:$0xff]
  %v25 = vld [vmem:[%s1 + $0x18] sm:$0xff]
  %v26 = vld [vmem:[%s1 + $0x20] sm:$0xff]
  %v27 = vld [vmem:[%s1 + $0x28] sm:$0xff]
  %v28 = vld [vmem:[%s1 + $0x30] sm:$0xff]
  %v29 = vld [vmem:[%s1 + $0x38] sm:$0xff]
  %v30 = vld [vmem:[%s1 + $0x40] sm:$0xff]
  %v31 = vld [vmem:[%s1 + $0x48] sm:$0xff]
  %v32 = vld [vmem:[%s1 + $0x50] sm:$0xff]
  %v33 = vld [vmem:[%s1 + $0x58] sm:$0xff]
  %v34 = vld [vmem:[%s1 + $0x60] sm:$0xff]
  %v35 = vld [vmem:[%s1 + $0x68] sm:$0xff]
  %v36 = vld [vmem:[%s1 + $0x70] sm:$0xff]
  %v37 = vld [vmem:[%s1 + $0x78] sm:$0xff]
  %v38 = vld [vmem:[%s1 + $0x80] sm:$0xff]
  %v39 = vld [vmem:[%s1 + $0x88] sm:$0xff]
  %v40 = vld [vmem:[%s1 + $0x90] sm:$0xff]
  %v41 = vld [vmem:[%s1 + $0x98] sm:$0xff]
  %v42 = vld [vmem:[%s1 + $0xa0] sm:$0xff]
  %v43 = vld [vmem:[%s1 + $0xa8] sm:$0xff]
  %v44 = vld [vmem:[%s1 + $0xb0] sm:$0xff]
  %v45 = vld [vmem:[%s1 + $0xb8] sm:$0xff]
  %v46 = vld [vmem:[%s1 + $0xc0] sm:$0xff]
  %v47 = vld [vmem:[%s1 + $0xc8] sm:$0xff]
  %v48 = vld [vmem:[%s1 + $0xd0] sm:$0xff]
  %v49 = vld [vmem:[%s1 + $0xd8] sm:$0xff]
  %v50 = vld [vmem:[%s1 + $0xe0] sm:$0xff]
  %v51 = vld [vmem:[%s1 + $0xe8] sm:$0xff]
  %v52 = vld [vmem:[%s1 + $0xf0] sm:$0xff]
  %v53 = vld [vmem:[%s1 + $0xf8] sm:$0xff]
  %v54 = vld [vmem:[%s3] sm:$0x3]
  %v56 = vperm.slane %v54, 0
  %v57 = vperm.slane %v54, 1
  %60 = vmatpush.msra.mxu0 %v52
  %61 = vmatpush.msra.mxu0 %v50
  %62 = vmatpush.msra.mxu0 %v48
  %63 = vmatpush.msra.mxu0 %v46
  %64 = vmatpush.msra.mxu0 %v44
  %65 = vmatpush.msra.mxu0 %v42
  %66 = vmatpush.msra.mxu0 %v40
  %67 = vmatpush.msra.mxu0 %v38
  %68 = vmatpush.msra.mxu0 %v36
  %69 = vmatpush.msra.mxu0 %v34
  %70 = vmatpush.msra.mxu0 %v32
  %71 = vmatpush.msra.mxu0 %v30
  %72 = vmatpush.msra.mxu0 %v28
  %73 = vmatpush.msra.mxu0 %v26
  %74 = vmatpush.msra.mxu0 %v24
  %75 = vmatpush.msra.mxu0 %v22
  %76 = vmatmul.f32.gmra.mxu0 %v18
  %v77 = vpop.f32.mrf.mxu0
  %v78 = vadd.f32 %v56, %v77
  %79 = vmatmul.f32.gmra.mxu0 %v19
  %v80 = vpop.f32.mrf.mxu0
  %v81 = vadd.f32 %v56, %v80
  %82 = vmatmul.f32.gmra.mxu0 %v20
  %v83 = vpop.f32.mrf.mxu0
  %v84 = vadd.f32 %v56, %v83
  %85 = vmatmul.f32.gmra.mxu0 %v21
  %v86 = vpop.f32.mrf.mxu0
  %v87 = vadd.f32 %v56, %v86
  %88 = vdwg.mxu0
  %89 = vmatpush.msra.mxu0 %v53
  %90 = vmatpush.msra.mxu0 %v51
  %91 = vmatpush.msra.mxu0 %v49
  %92 = vmatpush.msra.mxu0 %v47
  %93 = vmatpush.msra.mxu0 %v45
  %94 = vmatpush.msra.mxu0 %v43
  %95 = vmatpush.msra.mxu0 %v41
  %96 = vmatpush.msra.mxu0 %v39
  %97 = vmatpush.msra.mxu0 %v37
  %98 = vmatpush.msra.mxu0 %v35
  %99 = vmatpush.msra.mxu0 %v33
  %100 = vmatpush.msra.mxu0 %v31
  %101 = vmatpush.msra.mxu0 %v29
  %102 = vmatpush.msra.mxu0 %v27
  %103 = vmatpush.msra.mxu0 %v25
  %104 = vmatpush.msra.mxu0 %v23
  %105 = vmatmul.f32.gmra.mxu0 %v18
  %v106 = vpop.f32.mrf.mxu0
  %v107 = vadd.f32 %v57, %v106
  %108 = vmatmul.f32.gmra.mxu0 %v19
  %v109 = vpop.f32.mrf.mxu0
  %v110 = vadd.f32 %v57, %v109
  %111 = vmatmul.f32.gmra.mxu0 %v20
  %v112 = vpop.f32.mrf.mxu0
  %v113 = vadd.f32 %v57, %v112
  %114 = vmatmul.f32.gmra.mxu0 %v21
  %v115 = vpop.f32.mrf.mxu0
  %v116 = vadd.f32 %v57, %v115
  %117 = vdwg.mxu0
  %118 = vst [vmem:[#allocation2] sm:$0xff] %v78
  %119 = vst [vmem:[#allocation2 + $0x8] sm:$0xff] %v107
  %120 = vst [vmem:[#allocation2 + $0x10] sm:$0xff] %v81
  %121 = vst [vmem:[#allocation2 + $0x18] sm:$0xff] %v110
  %122 = vst [vmem:[#allocation2 + $0x20] sm:$0xff] %v84
  %123 = vst [vmem:[#allocation2 + $0x28] sm:$0xff] %v113
  %124 = vst [vmem:[#allocation2 + $0x30] sm:$0xff] %v87
  %125 = vst [vmem:[#allocation2 + $0x38] sm:$0xff] %v116
  %v126 = vld [vmem:[%s2] sm:$0xff]
  %v127 = vld [vmem:[%s2 + $0x8] sm:$0xff]
  %v128 = vld [vmem:[%s2 + $0x10] sm:$0xff]
  %v129 = vld [vmem:[%s2 + $0x18] sm:$0xff]
  %v130 = vld [vmem:[%s2 + $0x20] sm:$0xff]
  %v131 = vld [vmem:[%s2 + $0x28] sm:$0xff]
  %v132 = vld [vmem:[%s2 + $0x30] sm:$0xff]
  %v133 = vld [vmem:[%s2 + $0x38] sm:$0xff]
  %v142 = vunpack.c.l.b16 %v126
  %v143 = vunpack.c.h.b16 %v126
  %v144 = vunpack.c.l.b16 %v127
  %v145 = vunpack.c.h.b16 %v127
  %v146 = vunpack.c.l.b16 %v128
  %v147 = vunpack.c.h.b16 %v128
  %v148 = vunpack.c.l.b16 %v129
  %v149 = vunpack.c.h.b16 %v129
  %v150 = vunpack.c.l.b16 %v130
  %v151 = vunpack.c.h.b16 %v130
  %v152 = vunpack.c.l.b16 %v131
  %v153 = vunpack.c.h.b16 %v131
  %v154 = vunpack.c.l.b16 %v132
  %v155 = vunpack.c.h.b16 %v132
  %v156 = vunpack.c.l.b16 %v133
  %v157 = vunpack.c.h.b16 %v133
  %v158 = vpack.c.b16 %v144, %v142
  %v159 = vpack.c.b16 %v145, %v143
  %v160 = vpack.c.b16 %v148, %v146
  %v161 = vpack.c.b16 %v149, %v147
  %v162 = vpack.c.b16 %v152, %v150
  %v163 = vpack.c.b16 %v153, %v151
  %v164 = vpack.c.b16 %v156, %v154
  %v165 = vpack.c.b16 %v157, %v155
  %vm174 = vcmask 523264
  %v176 = vsel %vm174, 0, 0
  %178 = vmatpush.bf16.msra.mxu0 0
  %179 = vmatpush.bf16.msra.mxu0 0
  %180 = vmatpush.bf16.msra.mxu0 0
  %181 = vmatpush.bf16.msra.mxu0 0
  %182 = vmatpush.bf16.msra.mxu0 %v164
  %183 = vmatpush.bf16.msra.mxu0 %v162
  %184 = vmatpush.bf16.msra.mxu0 %v160
  %185 = vmatpush.bf16.msra.mxu0 %v158
  %186 = vmatmul.bf16.gmra.mxu0 %v176
  %v187 = vpop.f32.mrf.mxu0
  %v188 = vadd.f32 0.0, %v187
  %v189 = vpop.f32.mrf.mxu0
  %190 = vdwg.mxu0
  %191 = vmatpush.bf16.msra.mxu0 0
  %192 = vmatpush.bf16.msra.mxu0 0
  %193 = vmatpush.bf16.msra.mxu0 0
  %194 = vmatpush.bf16.msra.mxu0 0
  %195 = vmatpush.bf16.msra.mxu0 %v165
  %196 = vmatpush.bf16.msra.mxu0 %v163
  %197 = vmatpush.bf16.msra.mxu0 %v161
  %198 = vmatpush.bf16.msra.mxu0 %v159
  %199 = vmatmul.bf16.gmra.mxu0 %v176
  %v200 = vpop.f32.mrf.mxu0
  %v201 = vadd.f32 0.0, %v200
  %v202 = vpop.f32.mrf.mxu0
  %203 = vdwg.mxu0
  %v204 = vld [vmem:[#allocation2] sm:$0x3]
  %v205 = vld [vmem:[#allocation2 + $0x8] sm:$0x3]
  %v206 = vadd.f32 %v204, %v188
  %v207 = vadd.f32 %v205, %v201
  %v208 = vxor.u32 %v206, 2147483648
  %v209 = vmul.f32 %v208, 1.442695
  %v210 = vpow.pop %v209
  %v211 = vadd.f32 %v210, 1.0
  %v212 = vrcp.pop %v211
  %v213 = vmul.f32 %v211, %v212
  %v214 = vsub.f32 1.0, %v213
  %v215 = vmul.f32 %v212, %v214
  %v216 = vadd.f32 %v212, %v215
  %vm217 = vweird.f32 %v211
  %vm218 = vweird.f32 %v212
  %vm219 = vmor %vm217, %vm218
  %v220 = vsel %vm219, %v212, %v216
  %v221 = vand.u32 2147483647, %v211
  %vm222 = vcmp.eq.f32.partialorder %v221, 8.507059e+37
  %v223 = vand.u32 %v211, 2147483648
  %v224 = vor.u32 1.1754944e-38, %v223
  %v225 = vsel %vm222, %v224, %v220
  %v226 = vmul.f32 1.0, %v225
  %v227 = vtanh.pop %v207
  %v228 = vxor.u32 %v207, 2147483648
  %v229 = vmul.f32 %v228, 1.442695
  %v230 = vpow.pop %v229
  %v231 = vadd.f32 %v230, 1.0
  %v232 = vrcp.pop %v231
  %v233 = vmul.f32 %v231, %v232
  %v234 = vsub.f32 1.0, %v233
  %v235 = vmul.f32 %v232, %v234
  %v236 = vadd.f32 %v232, %v235
  %vm237 = vweird.f32 %v231
  %vm238 = vweird.f32 %v232
  %vm239 = vmor %vm237, %vm238
  %v240 = vsel %vm239, %v232, %v236
  %v241 = vand.u32 2147483647, %v231
  %vm242 = vcmp.eq.f32.partialorder %v241, 8.507059e+37
  %v243 = vand.u32 %v231, 2147483648
  %v244 = vor.u32 1.1754944e-38, %v243
  %v245 = vsel %vm242, %v244, %v240
  %v246 = vmul.f32 1.0, %v245
  %v247 = vmul.f32 %v226, 0.0
  %v248 = vmul.f32 %v226, %v227
  %250 = vrot.lane.b32.xlu0 %v248, 64
  %v251 = vpop.permute.xlu0 %250
  %v253 = vadd.f32 %v247, %v251
  %v254 = vtanh.pop %v253
  %v255 = vmul.f32 %v246, %v254
  %257 = vrot.lane.b32.xlu0 %v255, 64
  %v258 = vpop.permute.xlu0 %257
  %vm260 = vcmask 517120
  %261 = vst.msk [vmem:[%s4] sm:$0x3] %vm260, %v258
  %v262 = vpack.c.bf16 %v255, %v255
  %v263 = vld [vmem:[%s2] sm:$0xff]
  %v264 = vld [vmem:[%s2 + $0x8] sm:$0xff]
  %v265 = vld [vmem:[%s2 + $0x10] sm:$0xff]
  %v266 = vld [vmem:[%s2 + $0x18] sm:$0xff]
  %v267 = vld [vmem:[%s2 + $0x20] sm:$0xff]
  %v268 = vld [vmem:[%s2 + $0x28] sm:$0xff]
  %v269 = vld [vmem:[%s2 + $0x30] sm:$0xff]
  %v270 = vld [vmem:[%s2 + $0x38] sm:$0xff]
  %272 = vrot.lane.b32.xlu0 %v262, 64
  %v273 = vpop.permute.xlu0 %272
  %v282 = vunpack.c.l.b16 %v263
  %v283 = vunpack.c.h.b16 %v263
  %v284 = vunpack.c.l.b16 %v264
  %v285 = vunpack.c.h.b16 %v264
  %v286 = vunpack.c.l.b16 %v265
  %v287 = vunpack.c.h.b16 %v265
  %v288 = vunpack.c.l.b16 %v266
  %v289 = vunpack.c.h.b16 %v266
  %v290 = vunpack.c.l.b16 %v267
  %v291 = vunpack.c.h.b16 %v267
  %v292 = vunpack.c.l.b16 %v268
  %v293 = vunpack.c.h.b16 %v268
  %v294 = vunpack.c.l.b16 %v269
  %v295 = vunpack.c.h.b16 %v269
  %v296 = vunpack.c.l.b16 %v270
  %v297 = vunpack.c.h.b16 %v270
  %v298 = vpack.c.b16 %v284, %v282
  %v299 = vpack.c.b16 %v285, %v283
  %v300 = vpack.c.b16 %v288, %v286
  %v301 = vpack.c.b16 %v289, %v287
  %v302 = vpack.c.b16 %v292, %v290
  %v303 = vpack.c.b16 %v293, %v291
  %v304 = vpack.c.b16 %v296, %v294
  %v305 = vpack.c.b16 %v297, %v295
  %v315 = vsel %vm174, %v273, 0
  %317 = vmatpush.bf16.msra.mxu0 0
  %318 = vmatpush.bf16.msra.mxu0 0
  %319 = vmatpush.bf16.msra.mxu0 0
  %320 = vmatpush.bf16.msra.mxu0 0
  %321 = vmatpush.bf16.msra.mxu0 %v304
  %322 = vmatpush.bf16.msra.mxu0 %v302
  %323 = vmatpush.bf16.msra.mxu0 %v300
  %324 = vmatpush.bf16.msra.mxu0 %v298
  %325 = vmatmul.bf16.gmra.mxu0 %v315
  %v326 = vpop.f32.mrf.mxu0
  %v327 = vadd.f32 0.0, %v326
  %v328 = vpop.f32.mrf.mxu0
  %329 = vdwg.mxu0
  %330 = vmatpush.bf16.msra.mxu0 0
  %331 = vmatpush.bf16.msra.mxu0 0
  %332 = vmatpush.bf16.msra.mxu0 0
  %333 = vmatpush.bf16.msra.mxu0 0
  %334 = vmatpush.bf16.msra.mxu0 %v305
  %335 = vmatpush.bf16.msra.mxu0 %v303
  %336 = vmatpush.bf16.msra.mxu0 %v301
  %337 = vmatpush.bf16.msra.mxu0 %v299
  %338 = vmatmul.bf16.gmra.mxu0 %v315
  %v339 = vpop.f32.mrf.mxu0
  %v340 = vadd.f32 0.0, %v339
  %v341 = vpop.f32.mrf.mxu0
  %342 = vdwg.mxu0
  %v343 = vld [vmem:[#allocation2] sm:$0xc]
  %v344 = vld [vmem:[#allocation2 + $0x8] sm:$0xc]
  %v347 = vrot.slane %v327, 6
  %v348 = vrot.slane %v340, 6
  %v351 = vadd.f32 %v343, %v347
  %v352 = vadd.f32 %v344, %v348
  %v353 = vxor.u32 %v351, 2147483648
  %v354 = vmul.f32 %v353, 1.442695
  %v355 = vpow.pop %v354
  %v356 = vadd.f32 %v355, 1.0
  %v357 = vrcp.pop %v356
  %v358 = vmul.f32 %v356, %v357
  %v359 = vsub.f32 1.0, %v358
  %v360 = vmul.f32 %v357, %v359
  %v361 = vadd.f32 %v357, %v360
  %vm362 = vweird.f32 %v356
  %vm363 = vweird.f32 %v357
  %vm364 = vmor %vm362, %vm363
  %v365 = vsel %vm364, %v357, %v361
  %v366 = vand.u32 2147483647, %v356
  %vm367 = vcmp.eq.f32.partialorder %v366, 8.507059e+37
  %v368 = vand.u32 %v356, 2147483648
  %v369 = vor.u32 1.1754944e-38, %v368
  %v370 = vsel %vm367, %v369, %v365
  %v371 = vmul.f32 1.0, %v370
  %v372 = vtanh.pop %v352
  %v373 = vxor.u32 %v352, 2147483648
  %v374 = vmul.f32 %v373, 1.442695
  %v375 = vpow.pop %v374
  %v376 = vadd.f32 %v375, 1.0
  %v377 = vrcp.pop %v376
  %v378 = vmul.f32 %v376, %v377
  %v379 = vsub.f32 1.0, %v378
  %v380 = vmul.f32 %v377, %v379
  %v381 = vadd.f32 %v377, %v380
  %vm382 = vweird.f32 %v376
  %vm383 = vweird.f32 %v377
  %vm384 = vmor %vm382, %vm383
  %v385 = vsel %vm384, %v377, %v381
  %v386 = vand.u32 2147483647, %v376
  %vm387 = vcmp.eq.f32.partialorder %v386, 8.507059e+37
  %v388 = vand.u32 %v376, 2147483648
  %v389 = vor.u32 1.1754944e-38, %v388
  %v390 = vsel %vm387, %v389, %v385
  %v391 = vmul.f32 1.0, %v390
  %v393 = vrot.slane %v253, 6
  %v395 = vmul.f32 %v371, %v393
  %v396 = vmul.f32 %v371, %v372
  %398 = vrot.lane.b32.xlu0 %v396, 64
  %v399 = vpop.permute.xlu0 %398
  %v401 = vadd.f32 %v395, %v399
  %v402 = vtanh.pop %v401
  %v403 = vmul.f32 %v391, %v402
  %405 = vrot.lane.b32.xlu0 %v403, 64
  %v406 = vpop.permute.xlu0 %405
  %vm408 = vcmask 519170
  %409 = vst.msk [vmem:[%s4] sm:$0xc] %vm408, %v406
  %v410 = vpack.c.bf16 %v403, %v403
  %v411 = vld [vmem:[%s2] sm:$0xff]
  %v412 = vld [vmem:[%s2 + $0x8] sm:$0xff]
  %v413 = vld [vmem:[%s2 + $0x10] sm:$0xff]
  %v414 = vld [vmem:[%s2 + $0x18] sm:$0xff]
  %v415 = vld [vmem:[%s2 + $0x20] sm:$0xff]
  %v416 = vld [vmem:[%s2 + $0x28] sm:$0xff]
  %v417 = vld [vmem:[%s2 + $0x30] sm:$0xff]
  %v418 = vld [vmem:[%s2 + $0x38] sm:$0xff]
  %v420 = vrot.slane %v410, 1
  %421 = vrot.lane.b32.xlu0 %v420, 64
  %v422 = vpop.permute.xlu0 %421
  %v431 = vunpack.c.l.b16 %v411
  %v432 = vunpack.c.h.b16 %v411
  %v433 = vunpack.c.l.b16 %v412
  %v434 = vunpack.c.h.b16 %v412
  %v435 = vunpack.c.l.b16 %v413
  %v436 = vunpack.c.h.b16 %v413
  %v437 = vunpack.c.l.b16 %v414
  %v438 = vunpack.c.h.b16 %v414
  %v439 = vunpack.c.l.b16 %v415
  %v440 = vunpack.c.h.b16 %v415
  %v441 = vunpack.c.l.b16 %v416
  %v442 = vunpack.c.h.b16 %v416
  %v443 = vunpack.c.l.b16 %v417
  %v444 = vunpack.c.h.b16 %v417
  %v445 = vunpack.c.l.b16 %v418
  %v446 = vunpack.c.h.b16 %v418
  %v447 = vpack.c.b16 %v433, %v431
  %v448 = vpack.c.b16 %v434, %v432
  %v449 = vpack.c.b16 %v437, %v435
  %v450 = vpack.c.b16 %v438, %v436
  %v451 = vpack.c.b16 %v441, %v439
  %v452 = vpack.c.b16 %v442, %v440
  %v453 = vpack.c.b16 %v445, %v443
  %v454 = vpack.c.b16 %v446, %v444
  %v464 = vsel %vm174, %v422, 0
  %466 = vmatpush.bf16.msra.mxu0 0
  %467 = vmatpush.bf16.msra.mxu0 0
  %468 = vmatpush.bf16.msra.mxu0 0
  %469 = vmatpush.bf16.msra.mxu0 0
  %470 = vmatpush.bf16.msra.mxu0 %v453
  %471 = vmatpush.bf16.msra.mxu0 %v451
  %472 = vmatpush.bf16.msra.mxu0 %v449
  %473 = vmatpush.bf16.msra.mxu0 %v447
  %474 = vmatmul.bf16.gmra.mxu0 %v464
  %v475 = vpop.f32.mrf.mxu0
  %v476 = vadd.f32 0.0, %v475
  %v477 = vpop.f32.mrf.mxu0
  %478 = vdwg.mxu0
  %479 = vmatpush.bf16.msra.mxu0 0
  %480 = vmatpush.bf16.msra.mxu0 0
  %481 = vmatpush.bf16.msra.mxu0 0
  %482 = vmatpush.bf16.msra.mxu0 0
  %483 = vmatpush.bf16.msra.mxu0 %v454
  %484 = vmatpush.bf16.msra.mxu0 %v452
  %485 = vmatpush.bf16.msra.mxu0 %v450
  %486 = vmatpush.bf16.msra.mxu0 %v448
  %487 = vmatmul.bf16.gmra.mxu0 %v464
  %v488 = vpop.f32.mrf.mxu0
  %v489 = vadd.f32 0.0, %v488
  %v490 = vpop.f32.mrf.mxu0
  %491 = vdwg.mxu0
  %v492 = vld [vmem:[#allocation2] sm:$0x30]
  %v493 = vld [vmem:[#allocation2 + $0x8] sm:$0x30]
  %v496 = vrot.slane %v476, 4
  %v497 = vrot.slane %v489, 4
  %v500 = vadd.f32 %v492, %v496
  %v501 = vadd.f32 %v493, %v497
  %v502 = vxor.u32 %v500, 2147483648
  %v503 = vmul.f32 %v502, 1.442695
  %v504 = vpow.pop %v503
  %v505 = vadd.f32 %v504, 1.0
  %v506 = vrcp.pop %v505
  %v507 = vmul.f32 %v505, %v506
  %v508 = vsub.f32 1.0, %v507
  %v509 = vmul.f32 %v506, %v508
  %v510 = vadd.f32 %v506, %v509
  %vm511 = vweird.f32 %v505
  %vm512 = vweird.f32 %v506
  %vm513 = vmor %vm511, %vm512
  %v514 = vsel %vm513, %v506, %v510
  %v515 = vand.u32 2147483647, %v505
  %vm516 = vcmp.eq.f32.partialorder %v515, 8.507059e+37
  %v517 = vand.u32 %v505, 2147483648
  %v518 = vor.u32 1.1754944e-38, %v517
  %v519 = vsel %vm516, %v518, %v514
  %v520 = vmul.f32 1.0, %v519
  %v521 = vtanh.pop %v501
  %v522 = vxor.u32 %v501, 2147483648
  %v523 = vmul.f32 %v522, 1.442695
  %v524 = vpow.pop %v523
  %v525 = vadd.f32 %v524, 1.0
  %v526 = vrcp.pop %v525
  %v527 = vmul.f32 %v525, %v526
  %v528 = vsub.f32 1.0, %v527
  %v529 = vmul.f32 %v526, %v528
  %v530 = vadd.f32 %v526, %v529
  %vm531 = vweird.f32 %v525
  %vm532 = vweird.f32 %v526
  %vm533 = vmor %vm531, %vm532
  %v534 = vsel %vm533, %v526, %v530
  %v535 = vand.u32 2147483647, %v525
  %vm536 = vcmp.eq.f32.partialorder %v535, 8.507059e+37
  %v537 = vand.u32 %v525, 2147483648
  %v538 = vor.u32 1.1754944e-38, %v537
  %v539 = vsel %vm536, %v538, %v534
  %v540 = vmul.f32 1.0, %v539
  %v542 = vrot.slane %v401, 6
  %v544 = vmul.f32 %v520, %v542
  %v545 = vmul.f32 %v520, %v521
  %547 = vrot.lane.b32.xlu0 %v545, 64
  %v548 = vpop.permute.xlu0 %547
  %v550 = vadd.f32 %v544, %v548
  %v551 = vtanh.pop %v550
  %v552 = vmul.f32 %v540, %v551
  %554 = vrot.lane.b32.xlu0 %v552, 64
  %v555 = vpop.permute.xlu0 %554
  %vm557 = vcmask 521220
  %558 = vst.msk [vmem:[%s4] sm:$0x30] %vm557, %v555
  %v559 = vpack.c.bf16 %v552, %v552
  %v560 = vld [vmem:[%s2] sm:$0xff]
  %v561 = vld [vmem:[%s2 + $0x8] sm:$0xff]
  %v562 = vld [vmem:[%s2 + $0x10] sm:$0xff]
  %v563 = vld [vmem:[%s2 + $0x18] sm:$0xff]
  %v564 = vld [vmem:[%s2 + $0x20] sm:$0xff]
  %v565 = vld [vmem:[%s2 + $0x28] sm:$0xff]
  %v566 = vld [vmem:[%s2 + $0x30] sm:$0xff]
  %v567 = vld [vmem:[%s2 + $0x38] sm:$0xff]
  %v569 = vrot.slane %v559, 2
  %570 = vrot.lane.b32.xlu0 %v569, 64
  %v571 = vpop.permute.xlu0 %570
  %v580 = vunpack.c.l.b16 %v560
  %v581 = vunpack.c.h.b16 %v560
  %v582 = vunpack.c.l.b16 %v561
  %v583 = vunpack.c.h.b16 %v561
  %v584 = vunpack.c.l.b16 %v562
  %v585 = vunpack.c.h.b16 %v562
  %v586 = vunpack.c.l.b16 %v563
  %v587 = vunpack.c.h.b16 %v563
  %v588 = vunpack.c.l.b16 %v564
  %v589 = vunpack.c.h.b16 %v564
  %v590 = vunpack.c.l.b16 %v565
  %v591 = vunpack.c.h.b16 %v565
  %v592 = vunpack.c.l.b16 %v566
  %v593 = vunpack.c.h.b16 %v566
  %v594 = vunpack.c.l.b16 %v567
  %v595 = vunpack.c.h.b16 %v567
  %v596 = vpack.c.b16 %v582, %v580
  %v597 = vpack.c.b16 %v583, %v581
  %v598 = vpack.c.b16 %v586, %v584
  %v599 = vpack.c.b16 %v587, %v585
  %v600 = vpack.c.b16 %v590, %v588
  %v601 = vpack.c.b16 %v591, %v589
  %v602 = vpack.c.b16 %v594, %v592
  %v603 = vpack.c.b16 %v595, %v593
  %v613 = vsel %vm174, %v571, 0
  %615 = vmatpush.bf16.msra.mxu0 0
  %616 = vmatpush.bf16.msra.mxu0 0
  %617 = vmatpush.bf16.msra.mxu0 0
  %618 = vmatpush.bf16.msra.mxu0 0
  %619 = vmatpush.bf16.msra.mxu0 %v602
  %620 = vmatpush.bf16.msra.mxu0 %v600
  %621 = vmatpush.bf16.msra.mxu0 %v598
  %622 = vmatpush.bf16.msra.mxu0 %v596
  %623 = vmatmul.bf16.gmra.mxu0 %v613
  %v624 = vpop.f32.mrf.mxu0
  %v625 = vadd.f32 0.0, %v624
  %v626 = vpop.f32.mrf.mxu0
  %627 = vdwg.mxu0
  %628 = vmatpush.bf16.msra.mxu0 0
  %629 = vmatpush.bf16.msra.mxu0 0
  %630 = vmatpush.bf16.msra.mxu0 0
  %631 = vmatpush.bf16.msra.mxu0 0
  %632 = vmatpush.bf16.msra.mxu0 %v603
  %633 = vmatpush.bf16.msra.mxu0 %v601
  %634 = vmatpush.bf16.msra.mxu0 %v599
  %635 = vmatpush.bf16.msra.mxu0 %v597
  %636 = vmatmul.bf16.gmra.mxu0 %v613
  %v637 = vpop.f32.mrf.mxu0
  %v638 = vadd.f32 0.0, %v637
  %v639 = vpop.f32.mrf.mxu0
  %640 = vdwg.mxu0
  %v641 = vld [vmem:[#allocation2] sm:$0xc0]
  %v642 = vld [vmem:[#allocation2 + $0x8] sm:$0xc0]
  %v645 = vrot.slane %v625, 2
  %v646 = vrot.slane %v638, 2
  %v649 = vadd.f32 %v641, %v645
  %v650 = vadd.f32 %v642, %v646
  %v651 = vxor.u32 %v649, 2147483648
  %v652 = vmul.f32 %v651, 1.442695
  %v653 = vpow.pop %v652
  %v654 = vadd.f32 %v653, 1.0
  %v655 = vrcp.pop %v654
  %v656 = vmul.f32 %v654, %v655
  %v657 = vsub.f32 1.0, %v656
  %v658 = vmul.f32 %v655, %v657
  %v659 = vadd.f32 %v655, %v658
  %vm660 = vweird.f32 %v654
  %vm661 = vweird.f32 %v655
  %vm662 = vmor %vm660, %vm661
  %v663 = vsel %vm662, %v655, %v659
  %v664 = vand.u32 2147483647, %v654
  %vm665 = vcmp.eq.f32.partialorder %v664, 8.507059e+37
  %v666 = vand.u32 %v654, 2147483648
  %v667 = vor.u32 1.1754944e-38, %v666
  %v668 = vsel %vm665, %v667, %v663
  %v669 = vmul.f32 1.0, %v668
  %v670 = vtanh.pop %v650
  %v671 = vxor.u32 %v650, 2147483648
  %v672 = vmul.f32 %v671, 1.442695
  %v673 = vpow.pop %v672
  %v674 = vadd.f32 %v673, 1.0
  %v675 = vrcp.pop %v674
  %v676 = vmul.f32 %v674, %v675
  %v677 = vsub.f32 1.0, %v676
  %v678 = vmul.f32 %v675, %v677
  %v679 = vadd.f32 %v675, %v678
  %vm680 = vweird.f32 %v674
  %vm681 = vweird.f32 %v675
  %vm682 = vmor %vm680, %vm681
  %v683 = vsel %vm682, %v675, %v679
  %v684 = vand.u32 2147483647, %v674
  %vm685 = vcmp.eq.f32.partialorder %v684, 8.507059e+37
  %v686 = vand.u32 %v674, 2147483648
  %v687 = vor.u32 1.1754944e-38, %v686
  %v688 = vsel %vm685, %v687, %v683
  %v689 = vmul.f32 1.0, %v688
  %v691 = vrot.slane %v550, 6
  %v693 = vmul.f32 %v669, %v691
  %v694 = vmul.f32 %v669, %v670
  %696 = vrot.lane.b32.xlu0 %v694, 64
  %v697 = vpop.permute.xlu0 %696
  %v699 = vadd.f32 %v693, %v697
  %v700 = vtanh.pop %v699
  %v701 = vmul.f32 %v689, %v700
  %703 = vrot.lane.b32.xlu0 %v701, 64
  %v704 = vpop.permute.xlu0 %703
  %vm706 = vcmask 523270
  %707 = vst.msk [vmem:[%s4] sm:$0xc0] %vm706, %v704
  %v708 = vpack.c.bf16 %v701, %v701
  %v709 = vld [vmem:[%s2] sm:$0xff]
  %v710 = vld [vmem:[%s2 + $0x8] sm:$0xff]
  %v711 = vld [vmem:[%s2 + $0x10] sm:$0xff]
  %v712 = vld [vmem:[%s2 + $0x18] sm:$0xff]
  %v713 = vld [vmem:[%s2 + $0x20] sm:$0xff]
  %v714 = vld [vmem:[%s2 + $0x28] sm:$0xff]
  %v715 = vld [vmem:[%s2 + $0x30] sm:$0xff]
  %v716 = vld [vmem:[%s2 + $0x38] sm:$0xff]
  %v718 = vrot.slane %v708, 3
  %719 = vrot.lane.b32.xlu0 %v718, 64
  %v720 = vpop.permute.xlu0 %719
  %v729 = vunpack.c.l.b16 %v709
  %v730 = vunpack.c.h.b16 %v709
  %v731 = vunpack.c.l.b16 %v710
  %v732 = vunpack.c.h.b16 %v710
  %v733 = vunpack.c.l.b16 %v711
  %v734 = vunpack.c.h.b16 %v711
  %v735 = vunpack.c.l.b16 %v712
  %v736 = vunpack.c.h.b16 %v712
  %v737 = vunpack.c.l.b16 %v713
  %v738 = vunpack.c.h.b16 %v713
  %v739 = vunpack.c.l.b16 %v714
  %v740 = vunpack.c.h.b16 %v714
  %v741 = vunpack.c.l.b16 %v715
  %v742 = vunpack.c.h.b16 %v715
  %v743 = vunpack.c.l.b16 %v716
  %v744 = vunpack.c.h.b16 %v716
  %v745 = vpack.c.b16 %v731, %v729
  %v746 = vpack.c.b16 %v732, %v730
  %v747 = vpack.c.b16 %v735, %v733
  %v748 = vpack.c.b16 %v736, %v734
  %v749 = vpack.c.b16 %v739, %v737
  %v750 = vpack.c.b16 %v740, %v738
  %v751 = vpack.c.b16 %v743, %v741
  %v752 = vpack.c.b16 %v744, %v742
  %v762 = vsel %vm174, %v720, 0
  %764 = vmatpush.bf16.msra.mxu0 0
  %765 = vmatpush.bf16.msra.mxu0 0
  %766 = vmatpush.bf16.msra.mxu0 0
  %767 = vmatpush.bf16.msra.mxu0 0
  %768 = vmatpush.bf16.msra.mxu0 %v751
  %769 = vmatpush.bf16.msra.mxu0 %v749
  %770 = vmatpush.bf16.msra.mxu0 %v747
  %771 = vmatpush.bf16.msra.mxu0 %v745
  %772 = vmatmul.bf16.gmra.mxu0 %v762
  %v773 = vpop.f32.mrf.mxu0
  %v774 = vadd.f32 0.0, %v773
  %v775 = vpop.f32.mrf.mxu0
  %776 = vdwg.mxu0
  %777 = vmatpush.bf16.msra.mxu0 0
  %778 = vmatpush.bf16.msra.mxu0 0
  %779 = vmatpush.bf16.msra.mxu0 0
  %780 = vmatpush.bf16.msra.mxu0 0
  %781 = vmatpush.bf16.msra.mxu0 %v752
  %782 = vmatpush.bf16.msra.mxu0 %v750
  %783 = vmatpush.bf16.msra.mxu0 %v748
  %784 = vmatpush.bf16.msra.mxu0 %v746
  %785 = vmatmul.bf16.gmra.mxu0 %v762
  %v786 = vpop.f32.mrf.mxu0
  %v787 = vadd.f32 0.0, %v786
  %v788 = vpop.f32.mrf.mxu0
  %789 = vdwg.mxu0
  %v790 = vld [vmem:[#allocation2 + $0x10] sm:$0x3]
  %v791 = vld [vmem:[#allocation2 + $0x18] sm:$0x3]
  %v792 = vadd.f32 %v790, %v774
  %v793 = vadd.f32 %v791, %v787
  %v794 = vxor.u32 %v792, 2147483648
  %v795 = vmul.f32 %v794, 1.442695
  %v796 = vpow.pop %v795
  %v797 = vadd.f32 %v796, 1.0
  %v798 = vrcp.pop %v797
  %v799 = vmul.f32 %v797, %v798
  %v800 = vsub.f32 1.0, %v799
  %v801 = vmul.f32 %v798, %v800
  %v802 = vadd.f32 %v798, %v801
  %vm803 = vweird.f32 %v797
  %vm804 = vweird.f32 %v798
  %vm805 = vmor %vm803, %vm804
  %v806 = vsel %vm805, %v798, %v802
  %v807 = vand.u32 2147483647, %v797
  %vm808 = vcmp.eq.f32.partialorder %v807, 8.507059e+37
  %v809 = vand.u32 %v797, 2147483648
  %v810 = vor.u32 1.1754944e-38, %v809
  %v811 = vsel %vm808, %v810, %v806
  %v812 = vmul.f32 1.0, %v811
  %v813 = vtanh.pop %v793
  %v814 = vxor.u32 %v793, 2147483648
  %v815 = vmul.f32 %v814, 1.442695
  %v816 = vpow.pop %v815
  %v817 = vadd.f32 %v816, 1.0
  %v818 = vrcp.pop %v817
  %v819 = vmul.f32 %v817, %v818
  %v820 = vsub.f32 1.0, %v819
  %v821 = vmul.f32 %v818, %v820
  %v822 = vadd.f32 %v818, %v821
  %vm823 = vweird.f32 %v817
  %vm824 = vweird.f32 %v818
  %vm825 = vmor %vm823, %vm824
  %v826 = vsel %vm825, %v818, %v822
  %v827 = vand.u32 2147483647, %v817
  %vm828 = vcmp.eq.f32.partialorder %v827, 8.507059e+37
  %v829 = vand.u32 %v817, 2147483648
  %v830 = vor.u32 1.1754944e-38, %v829
  %v831 = vsel %vm828, %v830, %v826
  %v832 = vmul.f32 1.0, %v831
  %v834 = vrot.slane %v699, 6
  %v836 = vmul.f32 %v812, %v834
  %v837 = vmul.f32 %v812, %v813
  %839 = vrot.lane.b32.xlu0 %v837, 64
  %v840 = vpop.permute.xlu0 %839
  %v842 = vadd.f32 %v836, %v840
  %v843 = vtanh.pop %v842
  %v844 = vmul.f32 %v832, %v843
  %846 = vrot.lane.b32.xlu0 %v844, 64
  %v847 = vpop.permute.xlu0 %846
  %849 = vst.msk [vmem:[%s4 + $0x8] sm:$0x3] %vm260, %v847
  %v850 = vpack.c.bf16 %v844, %v844
  %v851 = vld [vmem:[%s2] sm:$0xff]
  %v852 = vld [vmem:[%s2 + $0x8] sm:$0xff]
  %v853 = vld [vmem:[%s2 + $0x10] sm:$0xff]
  %v854 = vld [vmem:[%s2 + $0x18] sm:$0xff]
  %v855 = vld [vmem:[%s2 + $0x20] sm:$0xff]
  %v856 = vld [vmem:[%s2 + $0x28] sm:$0xff]
  %v857 = vld [vmem:[%s2 + $0x30] sm:$0xff]
  %v858 = vld [vmem:[%s2 + $0x38] sm:$0xff]
  %860 = vrot.lane.b32.xlu0 %v850, 64
  %v861 = vpop.permute.xlu0 %860
  %v870 = vunpack.c.l.b16 %v851
  %v871 = vunpack.c.h.b16 %v851
  %v872 = vunpack.c.l.b16 %v852
  %v873 = vunpack.c.h.b16 %v852
  %v874 = vunpack.c.l.b16 %v853
  %v875 = vunpack.c.h.b16 %v853
  %v876 = vunpack.c.l.b16 %v854
  %v877 = vunpack.c.h.b16 %v854
  %v878 = vunpack.c.l.b16 %v855
  %v879 = vunpack.c.h.b16 %v855
  %v880 = vunpack.c.l.b16 %v856
  %v881 = vunpack.c.h.b16 %v856
  %v882 = vunpack.c.l.b16 %v857
  %v883 = vunpack.c.h.b16 %v857
  %v884 = vunpack.c.l.b16 %v858
  %v885 = vunpack.c.h.b16 %v858
  %v886 = vpack.c.b16 %v872, %v870
  %v887 = vpack.c.b16 %v873, %v871
  %v888 = vpack.c.b16 %v876, %v874
  %v889 = vpack.c.b16 %v877, %v875
  %v890 = vpack.c.b16 %v880, %v878
  %v891 = vpack.c.b16 %v881, %v879
  %v892 = vpack.c.b16 %v884, %v882
  %v893 = vpack.c.b16 %v885, %v883
  %v903 = vsel %vm174, %v861, 0
  %905 = vmatpush.bf16.msra.mxu0 0
  %906 = vmatpush.bf16.msra.mxu0 0
  %907 = vmatpush.bf16.msra.mxu0 0
  %908 = vmatpush.bf16.msra.mxu0 0
  %909 = vmatpush.bf16.msra.mxu0 %v892
  %910 = vmatpush.bf16.msra.mxu0 %v890
  %911 = vmatpush.bf16.msra.mxu0 %v888
  %912 = vmatpush.bf16.msra.mxu0 %v886
  %913 = vmatmul.bf16.gmra.mxu0 %v903
  %v914 = vpop.f32.mrf.mxu0
  %v915 = vadd.f32 0.0, %v914
  %v916 = vpop.f32.mrf.mxu0
  %917 = vdwg.mxu0
  %918 = vmatpush.bf16.msra.mxu0 0
  %919 = vmatpush.bf16.msra.mxu0 0
  %920 = vmatpush.bf16.msra.mxu0 0
  %921 = vmatpush.bf16.msra.mxu0 0
  %922 = vmatpush.bf16.msra.mxu0 %v893
  %923 = vmatpush.bf16.msra.mxu0 %v891
  %924 = vmatpush.bf16.msra.mxu0 %v889
  %925 = vmatpush.bf16.msra.mxu0 %v887
  %926 = vmatmul.bf16.gmra.mxu0 %v903
  %v927 = vpop.f32.mrf.mxu0
  %v928 = vadd.f32 0.0, %v927
  %v929 = vpop.f32.mrf.mxu0
  %930 = vdwg.mxu0
  %v931 = vld [vmem:[#allocation2 + $0x10] sm:$0xc]
  %v932 = vld [vmem:[#allocation2 + $0x18] sm:$0xc]
  %v935 = vrot.slane %v915, 6
  %v936 = vrot.slane %v928, 6
  %v939 = vadd.f32 %v931, %v935
  %v940 = vadd.f32 %v932, %v936
  %v941 = vxor.u32 %v939, 2147483648
  %v942 = vmul.f32 %v941, 1.442695
  %v943 = vpow.pop %v942
  %v944 = vadd.f32 %v943, 1.0
  %v945 = vrcp.pop %v944
  %v946 = vmul.f32 %v944, %v945
  %v947 = vsub.f32 1.0, %v946
  %v948 = vmul.f32 %v945, %v947
  %v949 = vadd.f32 %v945, %v948
  %vm950 = vweird.f32 %v944
  %vm951 = vweird.f32 %v945
  %vm952 = vmor %vm950, %vm951
  %v953 = vsel %vm952, %v945, %v949
  %v954 = vand.u32 2147483647, %v944
  %vm955 = vcmp.eq.f32.partialorder %v954, 8.507059e+37
  %v956 = vand.u32 %v944, 2147483648
  %v957 = vor.u32 1.1754944e-38, %v956
  %v958 = vsel %vm955, %v957, %v953
  %v959 = vmul.f32 1.0, %v958
  %v960 = vtanh.pop %v940
  %v961 = vxor.u32 %v940, 2147483648
  %v962 = vmul.f32 %v961, 1.442695
  %v963 = vpow.pop %v962
  %v964 = vadd.f32 %v963, 1.0
  %v965 = vrcp.pop %v964
  %v966 = vmul.f32 %v964, %v965
  %v967 = vsub.f32 1.0, %v966
  %v968 = vmul.f32 %v965, %v967
  %v969 = vadd.f32 %v965, %v968
  %vm970 = vweird.f32 %v964
  %vm971 = vweird.f32 %v965
  %vm972 = vmor %vm970, %vm971
  %v973 = vsel %vm972, %v965, %v969
  %v974 = vand.u32 2147483647, %v964
  %vm975 = vcmp.eq.f32.partialorder %v974, 8.507059e+37
  %v976 = vand.u32 %v964, 2147483648
  %v977 = vor.u32 1.1754944e-38, %v976
  %v978 = vsel %vm975, %v977, %v973
  %v979 = vmul.f32 1.0, %v978
  %v981 = vrot.slane %v842, 6
  %v983 = vmul.f32 %v959, %v981
  %v984 = vmul.f32 %v959, %v960
  %986 = vrot.lane.b32.xlu0 %v984, 64
  %v987 = vpop.permute.xlu0 %986
  %v989 = vadd.f32 %v983, %v987
  %v990 = vtanh.pop %v989
  %v991 = vmul.f32 %v979, %v990
  %993 = vrot.lane.b32.xlu0 %v991, 64
  %v994 = vpop.permute.xlu0 %993
  %996 = vst.msk [vmem:[%s4 + $0x8] sm:$0xc] %vm408, %v994
  %v997 = vpack.c.bf16 %v991, %v991
  %v998 = vld [vmem:[%s2] sm:$0xff]
  %v999 = vld [vmem:[%s2 + $0x8] sm:$0xff]
  %v1000 = vld [vmem:[%s2 + $0x10] sm:$0xff]
  %v1001 = vld [vmem:[%s2 + $0x18] sm:$0xff]
  %v1002 = vld [vmem:[%s2 + $0x20] sm:$0xff]
  %v1003 = vld [vmem:[%s2 + $0x28] sm:$0xff]
  %v1004 = vld [vmem:[%s2 + $0x30] sm:$0xff]
  %v1005 = vld [vmem:[%s2 + $0x38] sm:$0xff]
  %v1007 = vrot.slane %v997, 1
  %1008 = vrot.lane.b32.xlu0 %v1007, 64
  %v1009 = vpop.permute.xlu0 %1008
  %v1018 = vunpack.c.l.b16 %v998
  %v1019 = vunpack.c.h.b16 %v998
  %v1020 = vunpack.c.l.b16 %v999
  %v1021 = vunpack.c.h.b16 %v999
  %v1022 = vunpack.c.l.b16 %v1000
  %v1023 = vunpack.c.h.b16 %v1000
  %v1024 = vunpack.c.l.b16 %v1001
  %v1025 = vunpack.c.h.b16 %v1001
  %v1026 = vunpack.c.l.b16 %v1002
  %v1027 = vunpack.c.h.b16 %v1002
  %v1028 = vunpack.c.l.b16 %v1003
  %v1029 = vunpack.c.h.b16 %v1003
  %v1030 = vunpack.c.l.b16 %v1004
  %v1031 = vunpack.c.h.b16 %v1004
  %v1032 = vunpack.c.l.b16 %v1005
  %v1033 = vunpack.c.h.b16 %v1005
  %v1034 = vpack.c.b16 %v1020, %v1018
  %v1035 = vpack.c.b16 %v1021, %v1019
  %v1036 = vpack.c.b16 %v1024, %v1022
  %v1037 = vpack.c.b16 %v1025, %v1023
  %v1038 = vpack.c.b16 %v1028, %v1026
  %v1039 = vpack.c.b16 %v1029, %v1027
  %v1040 = vpack.c.b16 %v1032, %v1030
  %v1041 = vpack.c.b16 %v1033, %v1031
  %v1051 = vsel %vm174, %v1009, 0
  %1053 = vmatpush.bf16.msra.mxu0 0
  %1054 = vmatpush.bf16.msra.mxu0 0
  %1055 = vmatpush.bf16.msra.mxu0 0
  %1056 = vmatpush.bf16.msra.mxu0 0
  %1057 = vmatpush.bf16.msra.mxu0 %v1040
  %1058 = vmatpush.bf16.msra.mxu0 %v1038
  %1059 = vmatpush.bf16.msra.mxu0 %v1036
  %1060 = vmatpush.bf16.msra.mxu0 %v1034
  %1061 = vmatmul.bf16.gmra.mxu0 %v1051
  %v1062 = vpop.f32.mrf.mxu0
  %v1063 = vadd.f32 0.0, %v1062
  %v1064 = vpop.f32.mrf.mxu0
  %1065 = vdwg.mxu0
  %1066 = vmatpush.bf16.msra.mxu0 0
  %1067 = vmatpush.bf16.msra.mxu0 0
  %1068 = vmatpush.bf16.msra.mxu0 0
  %1069 = vmatpush.bf16.msra.mxu0 0
  %1070 = vmatpush.bf16.msra.mxu0 %v1041
  %1071 = vmatpush.bf16.msra.mxu0 %v1039
  %1072 = vmatpush.bf16.msra.mxu0 %v1037
  %1073 = vmatpush.bf16.msra.mxu0 %v1035
  %1074 = vmatmul.bf16.gmra.mxu0 %v1051
  %v1075 = vpop.f32.mrf.mxu0
  %v1076 = vadd.f32 0.0, %v1075
  %v1077 = vpop.f32.mrf.mxu0
  %1078 = vdwg.mxu0
  %v1079 = vld [vmem:[#allocation2 + $0x10] sm:$0x30]
  %v1080 = vld [vmem:[#allocation2 + $0x18] sm:$0x30]
  %v1083 = vrot.slane %v1063, 4
  %v1084 = vrot.slane %v1076, 4
  %v1087 = vadd.f32 %v1079, %v1083
  %v1088 = vadd.f32 %v1080, %v1084
  %v1089 = vxor.u32 %v1087, 2147483648
  %v1090 = vmul.f32 %v1089, 1.442695
  %v1091 = vpow.pop %v1090
  %v1092 = vadd.f32 %v1091, 1.0
  %v1093 = vrcp.pop %v1092
  %v1094 = vmul.f32 %v1092, %v1093
  %v1095 = vsub.f32 1.0, %v1094
  %v1096 = vmul.f32 %v1093, %v1095
  %v1097 = vadd.f32 %v1093, %v1096
  %vm1098 = vweird.f32 %v1092
  %vm1099 = vweird.f32 %v1093
  %vm1100 = vmor %vm1098, %vm1099
  %v1101 = vsel %vm1100, %v1093, %v1097
  %v1102 = vand.u32 2147483647, %v1092
  %vm1103 = vcmp.eq.f32.partialorder %v1102, 8.507059e+37
  %v1104 = vand.u32 %v1092, 2147483648
  %v1105 = vor.u32 1.1754944e-38, %v1104
  %v1106 = vsel %vm1103, %v1105, %v1101
  %v1107 = vmul.f32 1.0, %v1106
  %v1108 = vtanh.pop %v1088
  %v1109 = vxor.u32 %v1088, 2147483648
  %v1110 = vmul.f32 %v1109, 1.442695
  %v1111 = vpow.pop %v1110
  %v1112 = vadd.f32 %v1111, 1.0
  %v1113 = vrcp.pop %v1112
  %v1114 = vmul.f32 %v1112, %v1113
  %v1115 = vsub.f32 1.0, %v1114
  %v1116 = vmul.f32 %v1113, %v1115
  %v1117 = vadd.f32 %v1113, %v1116
  %vm1118 = vweird.f32 %v1112
  %vm1119 = vweird.f32 %v1113
  %vm1120 = vmor %vm1118, %vm1119
  %v1121 = vsel %vm1120, %v1113, %v1117
  %v1122 = vand.u32 2147483647, %v1112
  %vm1123 = vcmp.eq.f32.partialorder %v1122, 8.507059e+37
  %v1124 = vand.u32 %v1112, 2147483648
  %v1125 = vor.u32 1.1754944e-38, %v1124
  %v1126 = vsel %vm1123, %v1125, %v1121
  %v1127 = vmul.f32 1.0, %v1126
  %v1129 = vrot.slane %v989, 6
  %v1131 = vmul.f32 %v1107, %v1129
  %v1132 = vmul.f32 %v1107, %v1108
  %1134 = vrot.lane.b32.xlu0 %v1132, 64
  %v1135 = vpop.permute.xlu0 %1134
  %v1137 = vadd.f32 %v1131, %v1135
  %v1138 = vtanh.pop %v1137
  %v1139 = vmul.f32 %v1127, %v1138
  %1141 = vrot.lane.b32.xlu0 %v1139, 64
  %v1142 = vpop.permute.xlu0 %1141
  %1144 = vst.msk [vmem:[%s4 + $0x8] sm:$0x30] %vm557, %v1142
  %v1145 = vpack.c.bf16 %v1139, %v1139
  %v1146 = vld [vmem:[%s2] sm:$0xff]
  %v1147 = vld [vmem:[%s2 + $0x8] sm:$0xff]
  %v1148 = vld [vmem:[%s2 + $0x10] sm:$0xff]
  %v1149 = vld [vmem:[%s2 + $0x18] sm:$0xff]
  %v1150 = vld [vmem:[%s2 + $0x20] sm:$0xff]
  %v1151 = vld [vmem:[%s2 + $0x28] sm:$0xff]
  %v1152 = vld [vmem:[%s2 + $0x30] sm:$0xff]
  %v1153 = vld [vmem:[%s2 + $0x38] sm:$0xff]
  %v1155 = vrot.slane %v1145, 2
  %1156 = vrot.lane.b32.xlu0 %v1155, 64
  %v1157 = vpop.permute.xlu0 %1156
  %v1166 = vunpack.c.l.b16 %v1146
  %v1167 = vunpack.c.h.b16 %v1146
  %v1168 = vunpack.c.l.b16 %v1147
  %v1169 = vunpack.c.h.b16 %v1147
  %v1170 = vunpack.c.l.b16 %v1148
  %v1171 = vunpack.c.h.b16 %v1148
  %v1172 = vunpack.c.l.b16 %v1149
  %v1173 = vunpack.c.h.b16 %v1149
  %v1174 = vunpack.c.l.b16 %v1150
  %v1175 = vunpack.c.h.b16 %v1150
  %v1176 = vunpack.c.l.b16 %v1151
  %v1177 = vunpack.c.h.b16 %v1151
  %v1178 = vunpack.c.l.b16 %v1152
  %v1179 = vunpack.c.h.b16 %v1152
  %v1180 = vunpack.c.l.b16 %v1153
  %v1181 = vunpack.c.h.b16 %v1153
  %v1182 = vpack.c.b16 %v1168, %v1166
  %v1183 = vpack.c.b16 %v1169, %v1167
  %v1184 = vpack.c.b16 %v1172, %v1170
  %v1185 = vpack.c.b16 %v1173, %v1171
  %v1186 = vpack.c.b16 %v1176, %v1174
  %v1187 = vpack.c.b16 %v1177, %v1175
  %v1188 = vpack.c.b16 %v1180, %v1178
  %v1189 = vpack.c.b16 %v1181, %v1179
  %v1199 = vsel %vm174, %v1157, 0
  %1201 = vmatpush.bf16.msra.mxu0 0
  %1202 = vmatpush.bf16.msra.mxu0 0
  %1203 = vmatpush.bf16.msra.mxu0 0
  %1204 = vmatpush.bf16.msra.mxu0 0
  %1205 = vmatpush.bf16.msra.mxu0 %v1188
  %1206 = vmatpush.bf16.msra.mxu0 %v1186
  %1207 = vmatpush.bf16.msra.mxu0 %v1184
  %1208 = vmatpush.bf16.msra.mxu0 %v1182
  %1209 = vmatmul.bf16.gmra.mxu0 %v1199
  %v1210 = vpop.f32.mrf.mxu0
  %v1211 = vadd.f32 0.0, %v1210
  %v1212 = vpop.f32.mrf.mxu0
  %1213 = vdwg.mxu0
  %1214 = vmatpush.bf16.msra.mxu0 0
  %1215 = vmatpush.bf16.msra.mxu0 0
  %1216 = vmatpush.bf16.msra.mxu0 0
  %1217 = vmatpush.bf16.msra.mxu0 0
  %1218 = vmatpush.bf16.msra.mxu0 %v1189
  %1219 = vmatpush.bf16.msra.mxu0 %v1187
  %1220 = vmatpush.bf16.msra.mxu0 %v1185
  %1221 = vmatpush.bf16.msra.mxu0 %v1183
  %1222 = vmatmul.bf16.gmra.mxu0 %v1199
  %v1223 = vpop.f32.mrf.mxu0
  %v1224 = vadd.f32 0.0, %v1223
  %v1225 = vpop.f32.mrf.mxu0
  %1226 = vdwg.mxu0
  %v1227 = vld [vmem:[#allocation2 + $0x10] sm:$0xc0]
  %v1228 = vld [vmem:[#allocation2 + $0x18] sm:$0xc0]
  %v1231 = vrot.slane %v1211, 2
  %v1232 = vrot.slane %v1224, 2
  %v1235 = vadd.f32 %v1227, %v1231
  %v1236 = vadd.f32 %v1228, %v1232
  %v1237 = vxor.u32 %v1235, 2147483648
  %v1238 = vmul.f32 %v1237, 1.442695
  %v1239 = vpow.pop %v1238
  %v1240 = vadd.f32 %v1239, 1.0
  %v1241 = vrcp.pop %v1240
  %v1242 = vmul.f32 %v1240, %v1241
  %v1243 = vsub.f32 1.0, %v1242
  %v1244 = vmul.f32 %v1241, %v1243
  %v1245 = vadd.f32 %v1241, %v1244
  %vm1246 = vweird.f32 %v1240
  %vm1247 = vweird.f32 %v1241
  %vm1248 = vmor %vm1246, %vm1247
  %v1249 = vsel %vm1248, %v1241, %v1245
  %v1250 = vand.u32 2147483647, %v1240
  %vm1251 = vcmp.eq.f32.partialorder %v1250, 8.507059e+37
  %v1252 = vand.u32 %v1240, 2147483648
  %v1253 = vor.u32 1.1754944e-38, %v1252
  %v1254 = vsel %vm1251, %v1253, %v1249
  %v1255 = vmul.f32 1.0, %v1254
  %v1256 = vtanh.pop %v1236
  %v1257 = vxor.u32 %v1236, 2147483648
  %v1258 = vmul.f32 %v1257, 1.442695
  %v1259 = vpow.pop %v1258
  %v1260 = vadd.f32 %v1259, 1.0
  %v1261 = vrcp.pop %v1260
  %v1262 = vmul.f32 %v1260, %v1261
  %v1263 = vsub.f32 1.0, %v1262
  %v1264 = vmul.f32 %v1261, %v1263
  %v1265 = vadd.f32 %v1261, %v1264
  %vm1266 = vweird.f32 %v1260
  %vm1267 = vweird.f32 %v1261
  %vm1268 = vmor %vm1266, %vm1267
  %v1269 = vsel %vm1268, %v1261, %v1265
  %v1270 = vand.u32 2147483647, %v1260
  %vm1271 = vcmp.eq.f32.partialorder %v1270, 8.507059e+37
  %v1272 = vand.u32 %v1260, 2147483648
  %v1273 = vor.u32 1.1754944e-38, %v1272
  %v1274 = vsel %vm1271, %v1273, %v1269
  %v1275 = vmul.f32 1.0, %v1274
  %v1277 = vrot.slane %v1137, 6
  %v1279 = vmul.f32 %v1255, %v1277
  %v1280 = vmul.f32 %v1255, %v1256
  %1282 = vrot.lane.b32.xlu0 %v1280, 64
  %v1283 = vpop.permute.xlu0 %1282
  %v1285 = vadd.f32 %v1279, %v1283
  %v1286 = vtanh.pop %v1285
  %v1287 = vmul.f32 %v1275, %v1286
  %1289 = vrot.lane.b32.xlu0 %v1287, 64
  %v1290 = vpop.permute.xlu0 %1289
  %1292 = vst.msk [vmem:[%s4 + $0x8] sm:$0xc0] %vm706, %v1290
  %v1293 = vpack.c.bf16 %v1287, %v1287
  %v1294 = vld [vmem:[%s2] sm:$0xff]
  %v1295 = vld [vmem:[%s2 + $0x8] sm:$0xff]
  %v1296 = vld [vmem:[%s2 + $0x10] sm:$0xff]
  %v1297 = vld [vmem:[%s2 + $0x18] sm:$0xff]
  %v1298 = vld [vmem:[%s2 + $0x20] sm:$0xff]
  %v1299 = vld [vmem:[%s2 + $0x28] sm:$0xff]
  %v1300 = vld [vmem:[%s2 + $0x30] sm:$0xff]
  %v1301 = vld [vmem:[%s2 + $0x38] sm:$0xff]
  %v1303 = vrot.slane %v1293, 3
  %1304 = vrot.lane.b32.xlu0 %v1303, 64
  %v1305 = vpop.permute.xlu0 %1304
  %v1314 = vunpack.c.l.b16 %v1294
  %v1315 = vunpack.c.h.b16 %v1294
  %v1316 = vunpack.c.l.b16 %v1295
  %v1317 = vunpack.c.h.b16 %v1295
  %v1318 = vunpack.c.l.b16 %v1296
  %v1319 = vunpack.c.h.b16 %v1296
  %v1320 = vunpack.c.l.b16 %v1297
  %v1321 = vunpack.c.h.b16 %v1297
  %v1322 = vunpack.c.l.b16 %v1298
  %v1323 = vunpack.c.h.b16 %v1298
  %v1324 = vunpack.c.l.b16 %v1299
  %v1325 = vunpack.c.h.b16 %v1299
  %v1326 = vunpack.c.l.b16 %v1300
  %v1327 = vunpack.c.h.b16 %v1300
  %v1328 = vunpack.c.l.b16 %v1301
  %v1329 = vunpack.c.h.b16 %v1301
  %v1330 = vpack.c.b16 %v1316, %v1314
  %v1331 = vpack.c.b16 %v1317, %v1315
  %v1332 = vpack.c.b16 %v1320, %v1318
  %v1333 = vpack.c.b16 %v1321, %v1319
  %v1334 = vpack.c.b16 %v1324, %v1322
  %v1335 = vpack.c.b16 %v1325, %v1323
  %v1336 = vpack.c.b16 %v1328, %v1326
  %v1337 = vpack.c.b16 %v1329, %v1327
  %v1347 = vsel %vm174, %v1305, 0
  %1349 = vmatpush.bf16.msra.mxu0 0
  %1350 = vmatpush.bf16.msra.mxu0 0
  %1351 = vmatpush.bf16.msra.mxu0 0
  %1352 = vmatpush.bf16.msra.mxu0 0
  %1353 = vmatpush.bf16.msra.mxu0 %v1336
  %1354 = vmatpush.bf16.msra.mxu0 %v1334
  %1355 = vmatpush.bf16.msra.mxu0 %v1332
  %1356 = vmatpush.bf16.msra.mxu0 %v1330
  %1357 = vmatmul.bf16.gmra.mxu0 %v1347
  %v1358 = vpop.f32.mrf.mxu0
  %v1359 = vadd.f32 0.0, %v1358
  %v1360 = vpop.f32.mrf.mxu0
  %1361 = vdwg.mxu0
  %1362 = vmatpush.bf16.msra.mxu0 0
  %1363 = vmatpush.bf16.msra.mxu0 0
  %1364 = vmatpush.bf16.msra.mxu0 0
  %1365 = vmatpush.bf16.msra.mxu0 0
  %1366 = vmatpush.bf16.msra.mxu0 %v1337
  %1367 = vmatpush.bf16.msra.mxu0 %v1335
  %1368 = vmatpush.bf16.msra.mxu0 %v1333
  %1369 = vmatpush.bf16.msra.mxu0 %v1331
  %1370 = vmatmul.bf16.gmra.mxu0 %v1347
  %v1371 = vpop.f32.mrf.mxu0
  %v1372 = vadd.f32 0.0, %v1371
  %v1373 = vpop.f32.mrf.mxu0
  %1374 = vdwg.mxu0
  %v1375 = vld [vmem:[#allocation2 + $0x20] sm:$0x3]
  %v1376 = vld [vmem:[#allocation2 + $0x28] sm:$0x3]
  %v1377 = vadd.f32 %v1375, %v1359
  %v1378 = vadd.f32 %v1376, %v1372
  %v1379 = vxor.u32 %v1377, 2147483648
  %v1380 = vmul.f32 %v1379, 1.442695
  %v1381 = vpow.pop %v1380
  %v1382 = vadd.f32 %v1381, 1.0
  %v1383 = vrcp.pop %v1382
  %v1384 = vmul.f32 %v1382, %v1383
  %v1385 = vsub.f32 1.0, %v1384
  %v1386 = vmul.f32 %v1383, %v1385
  %v1387 = vadd.f32 %v1383, %v1386
  %vm1388 = vweird.f32 %v1382
  %vm1389 = vweird.f32 %v1383
  %vm1390 = vmor %vm1388, %vm1389
  %v1391 = vsel %vm1390, %v1383, %v1387
  %v1392 = vand.u32 2147483647, %v1382
  %vm1393 = vcmp.eq.f32.partialorder %v1392, 8.507059e+37
  %v1394 = vand.u32 %v1382, 2147483648
  %v1395 = vor.u32 1.1754944e-38, %v1394
  %v1396 = vsel %vm1393, %v1395, %v1391
  %v1397 = vmul.f32 1.0, %v1396
  %v1398 = vtanh.pop %v1378
  %v1399 = vxor.u32 %v1378, 2147483648
  %v1400 = vmul.f32 %v1399, 1.442695
  %v1401 = vpow.pop %v1400
  %v1402 = vadd.f32 %v1401, 1.0
  %v1403 = vrcp.pop %v1402
  %v1404 = vmul.f32 %v1402, %v1403
  %v1405 = vsub.f32 1.0, %v1404
  %v1406 = vmul.f32 %v1403, %v1405
  %v1407 = vadd.f32 %v1403, %v1406
  %vm1408 = vweird.f32 %v1402
  %vm1409 = vweird.f32 %v1403
  %vm1410 = vmor %vm1408, %vm1409
  %v1411 = vsel %vm1410, %v1403, %v1407
  %v1412 = vand.u32 2147483647, %v1402
  %vm1413 = vcmp.eq.f32.partialorder %v1412, 8.507059e+37
  %v1414 = vand.u32 %v1402, 2147483648
  %v1415 = vor.u32 1.1754944e-38, %v1414
  %v1416 = vsel %vm1413, %v1415, %v1411
  %v1417 = vmul.f32 1.0, %v1416
  %v1419 = vrot.slane %v1285, 6
  %v1421 = vmul.f32 %v1397, %v1419
  %v1422 = vmul.f32 %v1397, %v1398
  %1424 = vrot.lane.b32.xlu0 %v1422, 64
  %v1425 = vpop.permute.xlu0 %1424
  %v1427 = vadd.f32 %v1421, %v1425
  %v1428 = vtanh.pop %v1427
  %v1429 = vmul.f32 %v1417, %v1428
  %1431 = vrot.lane.b32.xlu0 %v1429, 64
  %v1432 = vpop.permute.xlu0 %1431
  %1434 = vst.msk [vmem:[%s4 + $0x10] sm:$0x3] %vm260, %v1432
  %v1435 = vpack.c.bf16 %v1429, %v1429
  %v1436 = vld [vmem:[%s2] sm:$0xff]
  %v1437 = vld [vmem:[%s2 + $0x8] sm:$0xff]
  %v1438 = vld [vmem:[%s2 + $0x10] sm:$0xff]
  %v1439 = vld [vmem:[%s2 + $0x18] sm:$0xff]
  %v1440 = vld [vmem:[%s2 + $0x20] sm:$0xff]
  %v1441 = vld [vmem:[%s2 + $0x28] sm:$0xff]
  %v1442 = vld [vmem:[%s2 + $0x30] sm:$0xff]
  %v1443 = vld [vmem:[%s2 + $0x38] sm:$0xff]
  %1445 = vrot.lane.b32.xlu0 %v1435, 64
  %v1446 = vpop.permute.xlu0 %1445
  %v1455 = vunpack.c.l.b16 %v1436
  %v1456 = vunpack.c.h.b16 %v1436
  %v1457 = vunpack.c.l.b16 %v1437
  %v1458 = vunpack.c.h.b16 %v1437
  %v1459 = vunpack.c.l.b16 %v1438
  %v1460 = vunpack.c.h.b16 %v1438
  %v1461 = vunpack.c.l.b16 %v1439
  %v1462 = vunpack.c.h.b16 %v1439
  %v1463 = vunpack.c.l.b16 %v1440
  %v1464 = vunpack.c.h.b16 %v1440
  %v1465 = vunpack.c.l.b16 %v1441
  %v1466 = vunpack.c.h.b16 %v1441
  %v1467 = vunpack.c.l.b16 %v1442
  %v1468 = vunpack.c.h.b16 %v1442
  %v1469 = vunpack.c.l.b16 %v1443
  %v1470 = vunpack.c.h.b16 %v1443
  %v1471 = vpack.c.b16 %v1457, %v1455
  %v1472 = vpack.c.b16 %v1458, %v1456
  %v1473 = vpack.c.b16 %v1461, %v1459
  %v1474 = vpack.c.b16 %v1462, %v1460
  %v1475 = vpack.c.b16 %v1465, %v1463
  %v1476 = vpack.c.b16 %v1466, %v1464
  %v1477 = vpack.c.b16 %v1469, %v1467
  %v1478 = vpack.c.b16 %v1470, %v1468
  %v1488 = vsel %vm174, %v1446, 0
  %1490 = vmatpush.bf16.msra.mxu0 0
  %1491 = vmatpush.bf16.msra.mxu0 0
  %1492 = vmatpush.bf16.msra.mxu0 0
  %1493 = vmatpush.bf16.msra.mxu0 0
  %1494 = vmatpush.bf16.msra.mxu0 %v1477
  %1495 = vmatpush.bf16.msra.mxu0 %v1475
  %1496 = vmatpush.bf16.msra.mxu0 %v1473
  %1497 = vmatpush.bf16.msra.mxu0 %v1471
  %1498 = vmatmul.bf16.gmra.mxu0 %v1488
  %v1499 = vpop.f32.mrf.mxu0
  %v1500 = vadd.f32 0.0, %v1499
  %v1501 = vpop.f32.mrf.mxu0
  %1502 = vdwg.mxu0
  %1503 = vmatpush.bf16.msra.mxu0 0
  %1504 = vmatpush.bf16.msra.mxu0 0
  %1505 = vmatpush.bf16.msra.mxu0 0
  %1506 = vmatpush.bf16.msra.mxu0 0
  %1507 = vmatpush.bf16.msra.mxu0 %v1478
  %1508 = vmatpush.bf16.msra.mxu0 %v1476
  %1509 = vmatpush.bf16.msra.mxu0 %v1474
  %1510 = vmatpush.bf16.msra.mxu0 %v1472
  %1511 = vmatmul.bf16.gmra.mxu0 %v1488
  %v1512 = vpop.f32.mrf.mxu0
  %v1513 = vadd.f32 0.0, %v1512
  %v1514 = vpop.f32.mrf.mxu0
  %1515 = vdwg.mxu0
  %v1516 = vld [vmem:[#allocation2 + $0x20] sm:$0xc]
  %v1517 = vld [vmem:[#allocation2 + $0x28] sm:$0xc]
  %v1520 = vrot.slane %v1500, 6
  %v1521 = vrot.slane %v1513, 6
  %v1524 = vadd.f32 %v1516, %v1520
  %v1525 = vadd.f32 %v1517, %v1521
  %v1526 = vxor.u32 %v1524, 2147483648
  %v1527 = vmul.f32 %v1526, 1.442695
  %v1528 = vpow.pop %v1527
  %v1529 = vadd.f32 %v1528, 1.0
  %v1530 = vrcp.pop %v1529
  %v1531 = vmul.f32 %v1529, %v1530
  %v1532 = vsub.f32 1.0, %v1531
  %v1533 = vmul.f32 %v1530, %v1532
  %v1534 = vadd.f32 %v1530, %v1533
  %vm1535 = vweird.f32 %v1529
  %vm1536 = vweird.f32 %v1530
  %vm1537 = vmor %vm1535, %vm1536
  %v1538 = vsel %vm1537, %v1530, %v1534
  %v1539 = vand.u32 2147483647, %v1529
  %vm1540 = vcmp.eq.f32.partialorder %v1539, 8.507059e+37
  %v1541 = vand.u32 %v1529, 2147483648
  %v1542 = vor.u32 1.1754944e-38, %v1541
  %v1543 = vsel %vm1540, %v1542, %v1538
  %v1544 = vmul.f32 1.0, %v1543
  %v1545 = vtanh.pop %v1525
  %v1546 = vxor.u32 %v1525, 2147483648
  %v1547 = vmul.f32 %v1546, 1.442695
  %v1548 = vpow.pop %v1547
  %v1549 = vadd.f32 %v1548, 1.0
  %v1550 = vrcp.pop %v1549
  %v1551 = vmul.f32 %v1549, %v1550
  %v1552 = vsub.f32 1.0, %v1551
  %v1553 = vmul.f32 %v1550, %v1552
  %v1554 = vadd.f32 %v1550, %v1553
  %vm1555 = vweird.f32 %v1549
  %vm1556 = vweird.f32 %v1550
  %vm1557 = vmor %vm1555, %vm1556
  %v1558 = vsel %vm1557, %v1550, %v1554
  %v1559 = vand.u32 2147483647, %v1549
  %vm1560 = vcmp.eq.f32.partialorder %v1559, 8.507059e+37
  %v1561 = vand.u32 %v1549, 2147483648
  %v1562 = vor.u32 1.1754944e-38, %v1561
  %v1563 = vsel %vm1560, %v1562, %v1558
  %v1564 = vmul.f32 1.0, %v1563
  %v1566 = vrot.slane %v1427, 6
  %v1568 = vmul.f32 %v1544, %v1566
  %v1569 = vmul.f32 %v1544, %v1545
  %1571 = vrot.lane.b32.xlu0 %v1569, 64
  %v1572 = vpop.permute.xlu0 %1571
  %v1574 = vadd.f32 %v1568, %v1572
  %v1575 = vtanh.pop %v1574
  %v1576 = vmul.f32 %v1564, %v1575
  %1578 = vrot.lane.b32.xlu0 %v1576, 64
  %v1579 = vpop.permute.xlu0 %1578
  %1581 = vst.msk [vmem:[%s4 + $0x10] sm:$0xc] %vm408, %v1579
  %v1582 = vpack.c.bf16 %v1576, %v1576
  %v1583 = vld [vmem:[%s2] sm:$0xff]
  %v1584 = vld [vmem:[%s2 + $0x8] sm:$0xff]
  %v1585 = vld [vmem:[%s2 + $0x10] sm:$0xff]
  %v1586 = vld [vmem:[%s2 + $0x18] sm:$0xff]
  %v1587 = vld [vmem:[%s2 + $0x20] sm:$0xff]
  %v1588 = vld [vmem:[%s2 + $0x28] sm:$0xff]
  %v1589 = vld [vmem:[%s2 + $0x30] sm:$0xff]
  %v1590 = vld [vmem:[%s2 + $0x38] sm:$0xff]
  %v1592 = vrot.slane %v1582, 1
  %1593 = vrot.lane.b32.xlu0 %v1592, 64
  %v1594 = vpop.permute.xlu0 %1593
  %v1603 = vunpack.c.l.b16 %v1583
  %v1604 = vunpack.c.h.b16 %v1583
  %v1605 = vunpack.c.l.b16 %v1584
  %v1606 = vunpack.c.h.b16 %v1584
  %v1607 = vunpack.c.l.b16 %v1585
  %v1608 = vunpack.c.h.b16 %v1585
  %v1609 = vunpack.c.l.b16 %v1586
  %v1610 = vunpack.c.h.b16 %v1586
  %v1611 = vunpack.c.l.b16 %v1587
  %v1612 = vunpack.c.h.b16 %v1587
  %v1613 = vunpack.c.l.b16 %v1588
  %v1614 = vunpack.c.h.b16 %v1588
  %v1615 = vunpack.c.l.b16 %v1589
  %v1616 = vunpack.c.h.b16 %v1589
  %v1617 = vunpack.c.l.b16 %v1590
  %v1618 = vunpack.c.h.b16 %v1590
  %v1619 = vpack.c.b16 %v1605, %v1603
  %v1620 = vpack.c.b16 %v1606, %v1604
  %v1621 = vpack.c.b16 %v1609, %v1607
  %v1622 = vpack.c.b16 %v1610, %v1608
  %v1623 = vpack.c.b16 %v1613, %v1611
  %v1624 = vpack.c.b16 %v1614, %v1612
  %v1625 = vpack.c.b16 %v1617, %v1615
  %v1626 = vpack.c.b16 %v1618, %v1616
  %v1636 = vsel %vm174, %v1594, 0
  %1638 = vmatpush.bf16.msra.mxu0 0
  %1639 = vmatpush.bf16.msra.mxu0 0
  %1640 = vmatpush.bf16.msra.mxu0 0
  %1641 = vmatpush.bf16.msra.mxu0 0
  %1642 = vmatpush.bf16.msra.mxu0 %v1625
  %1643 = vmatpush.bf16.msra.mxu0 %v1623
  %1644 = vmatpush.bf16.msra.mxu0 %v1621
  %1645 = vmatpush.bf16.msra.mxu0 %v1619
  %1646 = vmatmul.bf16.gmra.mxu0 %v1636
  %v1647 = vpop.f32.mrf.mxu0
  %v1648 = vadd.f32 0.0, %v1647
  %v1649 = vpop.f32.mrf.mxu0
  %1650 = vdwg.mxu0
  %1651 = vmatpush.bf16.msra.mxu0 0
  %1652 = vmatpush.bf16.msra.mxu0 0
  %1653 = vmatpush.bf16.msra.mxu0 0
  %1654 = vmatpush.bf16.msra.mxu0 0
  %1655 = vmatpush.bf16.msra.mxu0 %v1626
  %1656 = vmatpush.bf16.msra.mxu0 %v1624
  %1657 = vmatpush.bf16.msra.mxu0 %v1622
  %1658 = vmatpush.bf16.msra.mxu0 %v1620
  %1659 = vmatmul.bf16.gmra.mxu0 %v1636
  %v1660 = vpop.f32.mrf.mxu0
  %v1661 = vadd.f32 0.0, %v1660
  %v1662 = vpop.f32.mrf.mxu0
  %1663 = vdwg.mxu0
  %v1664 = vld [vmem:[#allocation2 + $0x20] sm:$0x30]
  %v1665 = vld [vmem:[#allocation2 + $0x28] sm:$0x30]
  %v1668 = vrot.slane %v1648, 4
  %v1669 = vrot.slane %v1661, 4
  %v1672 = vadd.f32 %v1664, %v1668
  %v1673 = vadd.f32 %v1665, %v1669
  %v1674 = vxor.u32 %v1672, 2147483648
  %v1675 = vmul.f32 %v1674, 1.442695
  %v1676 = vpow.pop %v1675
  %v1677 = vadd.f32 %v1676, 1.0
  %v1678 = vrcp.pop %v1677
  %v1679 = vmul.f32 %v1677, %v1678
  %v1680 = vsub.f32 1.0, %v1679
  %v1681 = vmul.f32 %v1678, %v1680
  %v1682 = vadd.f32 %v1678, %v1681
  %vm1683 = vweird.f32 %v1677
  %vm1684 = vweird.f32 %v1678
  %vm1685 = vmor %vm1683, %vm1684
  %v1686 = vsel %vm1685, %v1678, %v1682
  %v1687 = vand.u32 2147483647, %v1677
  %vm1688 = vcmp.eq.f32.partialorder %v1687, 8.507059e+37
  %v1689 = vand.u32 %v1677, 2147483648
  %v1690 = vor.u32 1.1754944e-38, %v1689
  %v1691 = vsel %vm1688, %v1690, %v1686
  %v1692 = vmul.f32 1.0, %v1691
  %v1693 = vtanh.pop %v1673
  %v1694 = vxor.u32 %v1673, 2147483648
  %v1695 = vmul.f32 %v1694, 1.442695
  %v1696 = vpow.pop %v1695
  %v1697 = vadd.f32 %v1696, 1.0
  %v1698 = vrcp.pop %v1697
  %v1699 = vmul.f32 %v1697, %v1698
  %v1700 = vsub.f32 1.0, %v1699
  %v1701 = vmul.f32 %v1698, %v1700
  %v1702 = vadd.f32 %v1698, %v1701
  %vm1703 = vweird.f32 %v1697
  %vm1704 = vweird.f32 %v1698
  %vm1705 = vmor %vm1703, %vm1704
  %v1706 = vsel %vm1705, %v1698, %v1702
  %v1707 = vand.u32 2147483647, %v1697
  %vm1708 = vcmp.eq.f32.partialorder %v1707, 8.507059e+37
  %v1709 = vand.u32 %v1697, 2147483648
  %v1710 = vor.u32 1.1754944e-38, %v1709
  %v1711 = vsel %vm1708, %v1710, %v1706
  %v1712 = vmul.f32 1.0, %v1711
  %v1714 = vrot.slane %v1574, 6
  %v1716 = vmul.f32 %v1692, %v1714
  %v1717 = vmul.f32 %v1692, %v1693
  %1719 = vrot.lane.b32.xlu0 %v1717, 64
  %v1720 = vpop.permute.xlu0 %1719
  %v1722 = vadd.f32 %v1716, %v1720
  %v1723 = vtanh.pop %v1722
  %v1724 = vmul.f32 %v1712, %v1723
  %1726 = vrot.lane.b32.xlu0 %v1724, 64
  %v1727 = vpop.permute.xlu0 %1726
  %1729 = vst.msk [vmem:[%s4 + $0x10] sm:$0x30] %vm557, %v1727
  %v1730 = vpack.c.bf16 %v1724, %v1724
  %v1731 = vld [vmem:[%s2] sm:$0xff]
  %v1732 = vld [vmem:[%s2 + $0x8] sm:$0xff]
  %v1733 = vld [vmem:[%s2 + $0x10] sm:$0xff]
  %v1734 = vld [vmem:[%s2 + $0x18] sm:$0xff]
  %v1735 = vld [vmem:[%s2 + $0x20] sm:$0xff]
  %v1736 = vld [vmem:[%s2 + $0x28] sm:$0xff]
  %v1737 = vld [vmem:[%s2 + $0x30] sm:$0xff]
  %v1738 = vld [vmem:[%s2 + $0x38] sm:$0xff]
  %v1740 = vrot.slane %v1730, 2
  %1741 = vrot.lane.b32.xlu0 %v1740, 64
  %v1742 = vpop.permute.xlu0 %1741
  %v1751 = vunpack.c.l.b16 %v1731
  %v1752 = vunpack.c.h.b16 %v1731
  %v1753 = vunpack.c.l.b16 %v1732
  %v1754 = vunpack.c.h.b16 %v1732
  %v1755 = vunpack.c.l.b16 %v1733
  %v1756 = vunpack.c.h.b16 %v1733
  %v1757 = vunpack.c.l.b16 %v1734
  %v1758 = vunpack.c.h.b16 %v1734
  %v1759 = vunpack.c.l.b16 %v1735
  %v1760 = vunpack.c.h.b16 %v1735
  %v1761 = vunpack.c.l.b16 %v1736
  %v1762 = vunpack.c.h.b16 %v1736
  %v1763 = vunpack.c.l.b16 %v1737
  %v1764 = vunpack.c.h.b16 %v1737
  %v1765 = vunpack.c.l.b16 %v1738
  %v1766 = vunpack.c.h.b16 %v1738
  %v1767 = vpack.c.b16 %v1753, %v1751
  %v1768 = vpack.c.b16 %v1754, %v1752
  %v1769 = vpack.c.b16 %v1757, %v1755
  %v1770 = vpack.c.b16 %v1758, %v1756
  %v1771 = vpack.c.b16 %v1761, %v1759
  %v1772 = vpack.c.b16 %v1762, %v1760
  %v1773 = vpack.c.b16 %v1765, %v1763
  %v1774 = vpack.c.b16 %v1766, %v1764
  %v1784 = vsel %vm174, %v1742, 0
  %1786 = vmatpush.bf16.msra.mxu0 0
  %1787 = vmatpush.bf16.msra.mxu0 0
  %1788 = vmatpush.bf16.msra.mxu0 0
  %1789 = vmatpush.bf16.msra.mxu0 0
  %1790 = vmatpush.bf16.msra.mxu0 %v1773
  %1791 = vmatpush.bf16.msra.mxu0 %v1771
  %1792 = vmatpush.bf16.msra.mxu0 %v1769
  %1793 = vmatpush.bf16.msra.mxu0 %v1767
  %1794 = vmatmul.bf16.gmra.mxu0 %v1784
  %v1795 = vpop.f32.mrf.mxu0
  %v1796 = vadd.f32 0.0, %v1795
  %v1797 = vpop.f32.mrf.mxu0
  %1798 = vdwg.mxu0
  %1799 = vmatpush.bf16.msra.mxu0 0
  %1800 = vmatpush.bf16.msra.mxu0 0
  %1801 = vmatpush.bf16.msra.mxu0 0
  %1802 = vmatpush.bf16.msra.mxu0 0
  %1803 = vmatpush.bf16.msra.mxu0 %v1774
  %1804 = vmatpush.bf16.msra.mxu0 %v1772
  %1805 = vmatpush.bf16.msra.mxu0 %v1770
  %1806 = vmatpush.bf16.msra.mxu0 %v1768
  %1807 = vmatmul.bf16.gmra.mxu0 %v1784
  %v1808 = vpop.f32.mrf.mxu0
  %v1809 = vadd.f32 0.0, %v1808
  %v1810 = vpop.f32.mrf.mxu0
  %1811 = vdwg.mxu0
  %v1812 = vld [vmem:[#allocation2 + $0x20] sm:$0xc0]
  %v1813 = vld [vmem:[#allocation2 + $0x28] sm:$0xc0]
  %v1816 = vrot.slane %v1796, 2
  %v1817 = vrot.slane %v1809, 2
  %v1820 = vadd.f32 %v1812, %v1816
  %v1821 = vadd.f32 %v1813, %v1817
  %v1822 = vxor.u32 %v1820, 2147483648
  %v1823 = vmul.f32 %v1822, 1.442695
  %v1824 = vpow.pop %v1823
  %v1825 = vadd.f32 %v1824, 1.0
  %v1826 = vrcp.pop %v1825
  %v1827 = vmul.f32 %v1825, %v1826
  %v1828 = vsub.f32 1.0, %v1827
  %v1829 = vmul.f32 %v1826, %v1828
  %v1830 = vadd.f32 %v1826, %v1829
  %vm1831 = vweird.f32 %v1825
  %vm1832 = vweird.f32 %v1826
  %vm1833 = vmor %vm1831, %vm1832
  %v1834 = vsel %vm1833, %v1826, %v1830
  %v1835 = vand.u32 2147483647, %v1825
  %vm1836 = vcmp.eq.f32.partialorder %v1835, 8.507059e+37
  %v1837 = vand.u32 %v1825, 2147483648
  %v1838 = vor.u32 1.1754944e-38, %v1837
  %v1839 = vsel %vm1836, %v1838, %v1834
  %v1840 = vmul.f32 1.0, %v1839
  %v1841 = vtanh.pop %v1821
  %v1842 = vxor.u32 %v1821, 2147483648
  %v1843 = vmul.f32 %v1842, 1.442695
  %v1844 = vpow.pop %v1843
  %v1845 = vadd.f32 %v1844, 1.0
  %v1846 = vrcp.pop %v1845
  %v1847 = vmul.f32 %v1845, %v1846
  %v1848 = vsub.f32 1.0, %v1847
  %v1849 = vmul.f32 %v1846, %v1848
  %v1850 = vadd.f32 %v1846, %v1849
  %vm1851 = vweird.f32 %v1845
  %vm1852 = vweird.f32 %v1846
  %vm1853 = vmor %vm1851, %vm1852
  %v1854 = vsel %vm1853, %v1846, %v1850
  %v1855 = vand.u32 2147483647, %v1845
  %vm1856 = vcmp.eq.f32.partialorder %v1855, 8.507059e+37
  %v1857 = vand.u32 %v1845, 2147483648
  %v1858 = vor.u32 1.1754944e-38, %v1857
  %v1859 = vsel %vm1856, %v1858, %v1854
  %v1860 = vmul.f32 1.0, %v1859
  %v1862 = vrot.slane %v1722, 6
  %v1864 = vmul.f32 %v1840, %v1862
  %v1865 = vmul.f32 %v1840, %v1841
  %1867 = vrot.lane.b32.xlu0 %v1865, 64
  %v1868 = vpop.permute.xlu0 %1867
  %v1870 = vadd.f32 %v1864, %v1868
  %v1871 = vtanh.pop %v1870
  %v1872 = vmul.f32 %v1860, %v1871
  %1874 = vrot.lane.b32.xlu0 %v1872, 64
  %v1875 = vpop.permute.xlu0 %1874
  %1877 = vst.msk [vmem:[%s4 + $0x10] sm:$0xc0] %vm706, %v1875
  %v1878 = vpack.c.bf16 %v1872, %v1872
  %v1879 = vld [vmem:[%s2] sm:$0xff]
  %v1880 = vld [vmem:[%s2 + $0x8] sm:$0xff]
  %v1881 = vld [vmem:[%s2 + $0x10] sm:$0xff]
  %v1882 = vld [vmem:[%s2 + $0x18] sm:$0xff]
  %v1883 = vld [vmem:[%s2 + $0x20] sm:$0xff]
  %v1884 = vld [vmem:[%s2 + $0x28] sm:$0xff]
  %v1885 = vld [vmem:[%s2 + $0x30] sm:$0xff]
  %v1886 = vld [vmem:[%s2 + $0x38] sm:$0xff]
  %v1888 = vrot.slane %v1878, 3
  %1889 = vrot.lane.b32.xlu0 %v1888, 64
  %v1890 = vpop.permute.xlu0 %1889
  %v1899 = vunpack.c.l.b16 %v1879
  %v1900 = vunpack.c.h.b16 %v1879
  %v1901 = vunpack.c.l.b16 %v1880
  %v1902 = vunpack.c.h.b16 %v1880
  %v1903 = vunpack.c.l.b16 %v1881
  %v1904 = vunpack.c.h.b16 %v1881
  %v1905 = vunpack.c.l.b16 %v1882
  %v1906 = vunpack.c.h.b16 %v1882
  %v1907 = vunpack.c.l.b16 %v1883
  %v1908 = vunpack.c.h.b16 %v1883
  %v1909 = vunpack.c.l.b16 %v1884
  %v1910 = vunpack.c.h.b16 %v1884
  %v1911 = vunpack.c.l.b16 %v1885
  %v1912 = vunpack.c.h.b16 %v1885
  %v1913 = vunpack.c.l.b16 %v1886
  %v1914 = vunpack.c.h.b16 %v1886
  %v1915 = vpack.c.b16 %v1901, %v1899
  %v1916 = vpack.c.b16 %v1902, %v1900
  %v1917 = vpack.c.b16 %v1905, %v1903
  %v1918 = vpack.c.b16 %v1906, %v1904
  %v1919 = vpack.c.b16 %v1909, %v1907
  %v1920 = vpack.c.b16 %v1910, %v1908
  %v1921 = vpack.c.b16 %v1913, %v1911
  %v1922 = vpack.c.b16 %v1914, %v1912
  %v1932 = vsel %vm174, %v1890, 0
  %1934 = vmatpush.bf16.msra.mxu0 0
  %1935 = vmatpush.bf16.msra.mxu0 0
  %1936 = vmatpush.bf16.msra.mxu0 0
  %1937 = vmatpush.bf16.msra.mxu0 0
  %1938 = vmatpush.bf16.msra.mxu0 %v1921
  %1939 = vmatpush.bf16.msra.mxu0 %v1919
  %1940 = vmatpush.bf16.msra.mxu0 %v1917
  %1941 = vmatpush.bf16.msra.mxu0 %v1915
  %1942 = vmatmul.bf16.gmra.mxu0 %v1932
  %v1943 = vpop.f32.mrf.mxu0
  %v1944 = vadd.f32 0.0, %v1943
  %v1945 = vpop.f32.mrf.mxu0
  %1946 = vdwg.mxu0
  %1947 = vmatpush.bf16.msra.mxu0 0
  %1948 = vmatpush.bf16.msra.mxu0 0
  %1949 = vmatpush.bf16.msra.mxu0 0
  %1950 = vmatpush.bf16.msra.mxu0 0
  %1951 = vmatpush.bf16.msra.mxu0 %v1922
  %1952 = vmatpush.bf16.msra.mxu0 %v1920
  %1953 = vmatpush.bf16.msra.mxu0 %v1918
  %1954 = vmatpush.bf16.msra.mxu0 %v1916
  %1955 = vmatmul.bf16.gmra.mxu0 %v1932
  %v1956 = vpop.f32.mrf.mxu0
  %v1957 = vadd.f32 0.0, %v1956
  %v1958 = vpop.f32.mrf.mxu0
  %1959 = vdwg.mxu0
  %v1960 = vld [vmem:[#allocation2 + $0x30] sm:$0x3]
  %v1961 = vld [vmem:[#allocation2 + $0x38] sm:$0x3]
  %v1962 = vadd.f32 %v1960, %v1944
  %v1963 = vadd.f32 %v1961, %v1957
  %v1964 = vxor.u32 %v1962, 2147483648
  %v1965 = vmul.f32 %v1964, 1.442695
  %v1966 = vpow.pop %v1965
  %v1967 = vadd.f32 %v1966, 1.0
  %v1968 = vrcp.pop %v1967
  %v1969 = vmul.f32 %v1967, %v1968
  %v1970 = vsub.f32 1.0, %v1969
  %v1971 = vmul.f32 %v1968, %v1970
  %v1972 = vadd.f32 %v1968, %v1971
  %vm1973 = vweird.f32 %v1967
  %vm1974 = vweird.f32 %v1968
  %vm1975 = vmor %vm1973, %vm1974
  %v1976 = vsel %vm1975, %v1968, %v1972
  %v1977 = vand.u32 2147483647, %v1967
  %vm1978 = vcmp.eq.f32.partialorder %v1977, 8.507059e+37
  %v1979 = vand.u32 %v1967, 2147483648
  %v1980 = vor.u32 1.1754944e-38, %v1979
  %v1981 = vsel %vm1978, %v1980, %v1976
  %v1982 = vmul.f32 1.0, %v1981
  %v1983 = vtanh.pop %v1963
  %v1984 = vxor.u32 %v1963, 2147483648
  %v1985 = vmul.f32 %v1984, 1.442695
  %v1986 = vpow.pop %v1985
  %v1987 = vadd.f32 %v1986, 1.0
  %v1988 = vrcp.pop %v1987
  %v1989 = vmul.f32 %v1987, %v1988
  %v1990 = vsub.f32 1.0, %v1989
  %v1991 = vmul.f32 %v1988, %v1990
  %v1992 = vadd.f32 %v1988, %v1991
  %vm1993 = vweird.f32 %v1987
  %vm1994 = vweird.f32 %v1988
  %vm1995 = vmor %vm1993, %vm1994
  %v1996 = vsel %vm1995, %v1988, %v1992
  %v1997 = vand.u32 2147483647, %v1987
  %vm1998 = vcmp.eq.f32.partialorder %v1997, 8.507059e+37
  %v1999 = vand.u32 %v1987, 2147483648
  %v2000 = vor.u32 1.1754944e-38, %v1999
  %v2001 = vsel %vm1998, %v2000, %v1996
  %v2002 = vmul.f32 1.0, %v2001
  %v2004 = vrot.slane %v1870, 6
  %v2006 = vmul.f32 %v1982, %v2004
  %v2007 = vmul.f32 %v1982, %v1983
  %2009 = vrot.lane.b32.xlu0 %v2007, 64
  %v2010 = vpop.permute.xlu0 %2009
  %v2012 = vadd.f32 %v2006, %v2010
  %v2013 = vtanh.pop %v2012
  %v2014 = vmul.f32 %v2002, %v2013
  %2016 = vrot.lane.b32.xlu0 %v2014, 64
  %v2017 = vpop.permute.xlu0 %2016
  %2019 = vst.msk [vmem:[%s4 + $0x18] sm:$0x3] %vm260, %v2017
  %v2020 = vpack.c.bf16 %v2014, %v2014
  %v2021 = vld [vmem:[%s2] sm:$0xff]
  %v2022 = vld [vmem:[%s2 + $0x8] sm:$0xff]
  %v2023 = vld [vmem:[%s2 + $0x10] sm:$0xff]
  %v2024 = vld [vmem:[%s2 + $0x18] sm:$0xff]
  %v2025 = vld [vmem:[%s2 + $0x20] sm:$0xff]
  %v2026 = vld [vmem:[%s2 + $0x28] sm:$0xff]
  %v2027 = vld [vmem:[%s2 + $0x30] sm:$0xff]
  %v2028 = vld [vmem:[%s2 + $0x38] sm:$0xff]
  %2030 = vrot.lane.b32.xlu0 %v2020, 64
  %v2031 = vpop.permute.xlu0 %2030
  %v2040 = vunpack.c.l.b16 %v2021
  %v2041 = vunpack.c.h.b16 %v2021
  %v2042 = vunpack.c.l.b16 %v2022
  %v2043 = vunpack.c.h.b16 %v2022
  %v2044 = vunpack.c.l.b16 %v2023
  %v2045 = vunpack.c.h.b16 %v2023
  %v2046 = vunpack.c.l.b16 %v2024
  %v2047 = vunpack.c.h.b16 %v2024
  %v2048 = vunpack.c.l.b16 %v2025
  %v2049 = vunpack.c.h.b16 %v2025
  %v2050 = vunpack.c.l.b16 %v2026
  %v2051 = vunpack.c.h.b16 %v2026
  %v2052 = vunpack.c.l.b16 %v2027
  %v2053 = vunpack.c.h.b16 %v2027
  %v2054 = vunpack.c.l.b16 %v2028
  %v2055 = vunpack.c.h.b16 %v2028
  %v2056 = vpack.c.b16 %v2042, %v2040
  %v2057 = vpack.c.b16 %v2043, %v2041
  %v2058 = vpack.c.b16 %v2046, %v2044
  %v2059 = vpack.c.b16 %v2047, %v2045
  %v2060 = vpack.c.b16 %v2050, %v2048
  %v2061 = vpack.c.b16 %v2051, %v2049
  %v2062 = vpack.c.b16 %v2054, %v2052
  %v2063 = vpack.c.b16 %v2055, %v2053
  %v2073 = vsel %vm174, %v2031, 0
  %2075 = vmatpush.bf16.msra.mxu0 0
  %2076 = vmatpush.bf16.msra.mxu0 0
  %2077 = vmatpush.bf16.msra.mxu0 0
  %2078 = vmatpush.bf16.msra.mxu0 0
  %2079 = vmatpush.bf16.msra.mxu0 %v2062
  %2080 = vmatpush.bf16.msra.mxu0 %v2060
  %2081 = vmatpush.bf16.msra.mxu0 %v2058
  %2082 = vmatpush.bf16.msra.mxu0 %v2056
  %2083 = vmatmul.bf16.gmra.mxu0 %v2073
  %v2084 = vpop.f32.mrf.mxu0
  %v2085 = vadd.f32 0.0, %v2084
  %v2086 = vpop.f32.mrf.mxu0
  %2087 = vdwg.mxu0
  %2088 = vmatpush.bf16.msra.mxu0 0
  %2089 = vmatpush.bf16.msra.mxu0 0
  %2090 = vmatpush.bf16.msra.mxu0 0
  %2091 = vmatpush.bf16.msra.mxu0 0
  %2092 = vmatpush.bf16.msra.mxu0 %v2063
  %2093 = vmatpush.bf16.msra.mxu0 %v2061
  %2094 = vmatpush.bf16.msra.mxu0 %v2059
  %2095 = vmatpush.bf16.msra.mxu0 %v2057
  %2096 = vmatmul.bf16.gmra.mxu0 %v2073
  %v2097 = vpop.f32.mrf.mxu0
  %v2098 = vadd.f32 0.0, %v2097
  %v2099 = vpop.f32.mrf.mxu0
  %2100 = vdwg.mxu0
  %v2101 = vld [vmem:[#allocation2 + $0x30] sm:$0xc]
  %v2102 = vld [vmem:[#allocation2 + $0x38] sm:$0xc]
  %v2105 = vrot.slane %v2085, 6
  %v2106 = vrot.slane %v2098, 6
  %v2109 = vadd.f32 %v2101, %v2105
  %v2110 = vadd.f32 %v2102, %v2106
  %v2111 = vxor.u32 %v2109, 2147483648
  %v2112 = vmul.f32 %v2111, 1.442695
  %v2113 = vpow.pop %v2112
  %v2114 = vadd.f32 %v2113, 1.0
  %v2115 = vrcp.pop %v2114
  %v2116 = vmul.f32 %v2114, %v2115
  %v2117 = vsub.f32 1.0, %v2116
  %v2118 = vmul.f32 %v2115, %v2117
  %v2119 = vadd.f32 %v2115, %v2118
  %vm2120 = vweird.f32 %v2114
  %vm2121 = vweird.f32 %v2115
  %vm2122 = vmor %vm2120, %vm2121
  %v2123 = vsel %vm2122, %v2115, %v2119
  %v2124 = vand.u32 2147483647, %v2114
  %vm2125 = vcmp.eq.f32.partialorder %v2124, 8.507059e+37
  %v2126 = vand.u32 %v2114, 2147483648
  %v2127 = vor.u32 1.1754944e-38, %v2126
  %v2128 = vsel %vm2125, %v2127, %v2123
  %v2129 = vmul.f32 1.0, %v2128
  %v2130 = vtanh.pop %v2110
  %v2131 = vxor.u32 %v2110, 2147483648
  %v2132 = vmul.f32 %v2131, 1.442695
  %v2133 = vpow.pop %v2132
  %v2134 = vadd.f32 %v2133, 1.0
  %v2135 = vrcp.pop %v2134
  %v2136 = vmul.f32 %v2134, %v2135
  %v2137 = vsub.f32 1.0, %v2136
  %v2138 = vmul.f32 %v2135, %v2137
  %v2139 = vadd.f32 %v2135, %v2138
  %vm2140 = vweird.f32 %v2134
  %vm2141 = vweird.f32 %v2135
  %vm2142 = vmor %vm2140, %vm2141
  %v2143 = vsel %vm2142, %v2135, %v2139
  %v2144 = vand.u32 2147483647, %v2134
  %vm2145 = vcmp.eq.f32.partialorder %v2144, 8.507059e+37
  %v2146 = vand.u32 %v2134, 2147483648
  %v2147 = vor.u32 1.1754944e-38, %v2146
  %v2148 = vsel %vm2145, %v2147, %v2143
  %v2149 = vmul.f32 1.0, %v2148
  %v2151 = vrot.slane %v2012, 6
  %v2153 = vmul.f32 %v2129, %v2151
  %v2154 = vmul.f32 %v2129, %v2130
  %2156 = vrot.lane.b32.xlu0 %v2154, 64
  %v2157 = vpop.permute.xlu0 %2156
  %v2159 = vadd.f32 %v2153, %v2157
  %v2160 = vtanh.pop %v2159
  %v2161 = vmul.f32 %v2149, %v2160
  %2163 = vrot.lane.b32.xlu0 %v2161, 64
  %v2164 = vpop.permute.xlu0 %2163
  %2166 = vst.msk [vmem:[%s4 + $0x18] sm:$0xc] %vm408, %v2164
  %v2167 = vpack.c.bf16 %v2161, %v2161
  %v2168 = vld [vmem:[%s2] sm:$0xff]
  %v2169 = vld [vmem:[%s2 + $0x8] sm:$0xff]
  %v2170 = vld [vmem:[%s2 + $0x10] sm:$0xff]
  %v2171 = vld [vmem:[%s2 + $0x18] sm:$0xff]
  %v2172 = vld [vmem:[%s2 + $0x20] sm:$0xff]
  %v2173 = vld [vmem:[%s2 + $0x28] sm:$0xff]
  %v2174 = vld [vmem:[%s2 + $0x30] sm:$0xff]
  %v2175 = vld [vmem:[%s2 + $0x38] sm:$0xff]
  %v2177 = vrot.slane %v2167, 1
  %2178 = vrot.lane.b32.xlu0 %v2177, 64
  %v2179 = vpop.permute.xlu0 %2178
  %v2188 = vunpack.c.l.b16 %v2168
  %v2189 = vunpack.c.h.b16 %v2168
  %v2190 = vunpack.c.l.b16 %v2169
  %v2191 = vunpack.c.h.b16 %v2169
  %v2192 = vunpack.c.l.b16 %v2170
  %v2193 = vunpack.c.h.b16 %v2170
  %v2194 = vunpack.c.l.b16 %v2171
  %v2195 = vunpack.c.h.b16 %v2171
  %v2196 = vunpack.c.l.b16 %v2172
  %v2197 = vunpack.c.h.b16 %v2172
  %v2198 = vunpack.c.l.b16 %v2173
  %v2199 = vunpack.c.h.b16 %v2173
  %v2200 = vunpack.c.l.b16 %v2174
  %v2201 = vunpack.c.h.b16 %v2174
  %v2202 = vunpack.c.l.b16 %v2175
  %v2203 = vunpack.c.h.b16 %v2175
  %v2204 = vpack.c.b16 %v2190, %v2188
  %v2205 = vpack.c.b16 %v2191, %v2189
  %v2206 = vpack.c.b16 %v2194, %v2192
  %v2207 = vpack.c.b16 %v2195, %v2193
  %v2208 = vpack.c.b16 %v2198, %v2196
  %v2209 = vpack.c.b16 %v2199, %v2197
  %v2210 = vpack.c.b16 %v2202, %v2200
  %v2211 = vpack.c.b16 %v2203, %v2201
  %v2221 = vsel %vm174, %v2179, 0
  %2223 = vmatpush.bf16.msra.mxu0 0
  %2224 = vmatpush.bf16.msra.mxu0 0
  %2225 = vmatpush.bf16.msra.mxu0 0
  %2226 = vmatpush.bf16.msra.mxu0 0
  %2227 = vmatpush.bf16.msra.mxu0 %v2210
  %2228 = vmatpush.bf16.msra.mxu0 %v2208
  %2229 = vmatpush.bf16.msra.mxu0 %v2206
  %2230 = vmatpush.bf16.msra.mxu0 %v2204
  %2231 = vmatmul.bf16.gmra.mxu0 %v2221
  %v2232 = vpop.f32.mrf.mxu0
  %v2233 = vadd.f32 0.0, %v2232
  %v2234 = vpop.f32.mrf.mxu0
  %2235 = vdwg.mxu0
  %2236 = vmatpush.bf16.msra.mxu0 0
  %2237 = vmatpush.bf16.msra.mxu0 0
  %2238 = vmatpush.bf16.msra.mxu0 0
  %2239 = vmatpush.bf16.msra.mxu0 0
  %2240 = vmatpush.bf16.msra.mxu0 %v2211
  %2241 = vmatpush.bf16.msra.mxu0 %v2209
  %2242 = vmatpush.bf16.msra.mxu0 %v2207
  %2243 = vmatpush.bf16.msra.mxu0 %v2205
  %2244 = vmatmul.bf16.gmra.mxu0 %v2221
  %v2245 = vpop.f32.mrf.mxu0
  %v2246 = vadd.f32 0.0, %v2245
  %v2247 = vpop.f32.mrf.mxu0
  %2248 = vdwg.mxu0
  %v2249 = vld [vmem:[#allocation2 + $0x30] sm:$0x30]
  %v2250 = vld [vmem:[#allocation2 + $0x38] sm:$0x30]
  %v2253 = vrot.slane %v2233, 4
  %v2254 = vrot.slane %v2246, 4
  %v2257 = vadd.f32 %v2249, %v2253
  %v2258 = vadd.f32 %v2250, %v2254
  %v2259 = vxor.u32 %v2257, 2147483648
  %v2260 = vmul.f32 %v2259, 1.442695
  %v2261 = vpow.pop %v2260
  %v2262 = vadd.f32 %v2261, 1.0
  %v2263 = vrcp.pop %v2262
  %v2264 = vmul.f32 %v2262, %v2263
  %v2265 = vsub.f32 1.0, %v2264
  %v2266 = vmul.f32 %v2263, %v2265
  %v2267 = vadd.f32 %v2263, %v2266
  %vm2268 = vweird.f32 %v2262
  %vm2269 = vweird.f32 %v2263
  %vm2270 = vmor %vm2268, %vm2269
  %v2271 = vsel %vm2270, %v2263, %v2267
  %v2272 = vand.u32 2147483647, %v2262
  %vm2273 = vcmp.eq.f32.partialorder %v2272, 8.507059e+37
  %v2274 = vand.u32 %v2262, 2147483648
  %v2275 = vor.u32 1.1754944e-38, %v2274
  %v2276 = vsel %vm2273, %v2275, %v2271
  %v2277 = vmul.f32 1.0, %v2276
  %v2278 = vtanh.pop %v2258
  %v2279 = vxor.u32 %v2258, 2147483648
  %v2280 = vmul.f32 %v2279, 1.442695
  %v2281 = vpow.pop %v2280
  %v2282 = vadd.f32 %v2281, 1.0
  %v2283 = vrcp.pop %v2282
  %v2284 = vmul.f32 %v2282, %v2283
  %v2285 = vsub.f32 1.0, %v2284
  %v2286 = vmul.f32 %v2283, %v2285
  %v2287 = vadd.f32 %v2283, %v2286
  %vm2288 = vweird.f32 %v2282
  %vm2289 = vweird.f32 %v2283
  %vm2290 = vmor %vm2288, %vm2289
  %v2291 = vsel %vm2290, %v2283, %v2287
  %v2292 = vand.u32 2147483647, %v2282
  %vm2293 = vcmp.eq.f32.partialorder %v2292, 8.507059e+37
  %v2294 = vand.u32 %v2282, 2147483648
  %v2295 = vor.u32 1.1754944e-38, %v2294
  %v2296 = vsel %vm2293, %v2295, %v2291
  %v2297 = vmul.f32 1.0, %v2296
  %v2299 = vrot.slane %v2159, 6
  %v2301 = vmul.f32 %v2277, %v2299
  %v2302 = vmul.f32 %v2277, %v2278
  %2304 = vrot.lane.b32.xlu0 %v2302, 64
  %v2305 = vpop.permute.xlu0 %2304
  %v2307 = vadd.f32 %v2301, %v2305
  %v2308 = vtanh.pop %v2307
  %v2309 = vmul.f32 %v2297, %v2308
  %2311 = vrot.lane.b32.xlu0 %v2309, 64
  %v2312 = vpop.permute.xlu0 %2311
  %2314 = vst.msk [vmem:[%s4 + $0x18] sm:$0x30] %vm557, %v2312
  %v2315 = vpack.c.bf16 %v2309, %v2309
  %v2316 = vld [vmem:[%s2] sm:$0xff]
  %v2317 = vld [vmem:[%s2 + $0x8] sm:$0xff]
  %v2318 = vld [vmem:[%s2 + $0x10] sm:$0xff]
  %v2319 = vld [vmem:[%s2 + $0x18] sm:$0xff]
  %v2320 = vld [vmem:[%s2 + $0x20] sm:$0xff]
  %v2321 = vld [vmem:[%s2 + $0x28] sm:$0xff]
  %v2322 = vld [vmem:[%s2 + $0x30] sm:$0xff]
  %v2323 = vld [vmem:[%s2 + $0x38] sm:$0xff]
  %v2325 = vrot.slane %v2315, 2
  %2326 = vrot.lane.b32.xlu0 %v2325, 64
  %v2327 = vpop.permute.xlu0 %2326
  %v2336 = vunpack.c.l.b16 %v2316
  %v2337 = vunpack.c.h.b16 %v2316
  %v2338 = vunpack.c.l.b16 %v2317
  %v2339 = vunpack.c.h.b16 %v2317
  %v2340 = vunpack.c.l.b16 %v2318
  %v2341 = vunpack.c.h.b16 %v2318
  %v2342 = vunpack.c.l.b16 %v2319
  %v2343 = vunpack.c.h.b16 %v2319
  %v2344 = vunpack.c.l.b16 %v2320
  %v2345 = vunpack.c.h.b16 %v2320
  %v2346 = vunpack.c.l.b16 %v2321
  %v2347 = vunpack.c.h.b16 %v2321
  %v2348 = vunpack.c.l.b16 %v2322
  %v2349 = vunpack.c.h.b16 %v2322
  %v2350 = vunpack.c.l.b16 %v2323
  %v2351 = vunpack.c.h.b16 %v2323
  %v2352 = vpack.c.b16 %v2338, %v2336
  %v2353 = vpack.c.b16 %v2339, %v2337
  %v2354 = vpack.c.b16 %v2342, %v2340
  %v2355 = vpack.c.b16 %v2343, %v2341
  %v2356 = vpack.c.b16 %v2346, %v2344
  %v2357 = vpack.c.b16 %v2347, %v2345
  %v2358 = vpack.c.b16 %v2350, %v2348
  %v2359 = vpack.c.b16 %v2351, %v2349
  %v2369 = vsel %vm174, %v2327, 0
  %2371 = vmatpush.bf16.msra.mxu0 0
  %2372 = vmatpush.bf16.msra.mxu0 0
  %2373 = vmatpush.bf16.msra.mxu0 0
  %2374 = vmatpush.bf16.msra.mxu0 0
  %2375 = vmatpush.bf16.msra.mxu0 %v2358
  %2376 = vmatpush.bf16.msra.mxu0 %v2356
  %2377 = vmatpush.bf16.msra.mxu0 %v2354
  %2378 = vmatpush.bf16.msra.mxu0 %v2352
  %2379 = vmatmul.bf16.gmra.mxu0 %v2369
  %v2380 = vpop.f32.mrf.mxu0
  %v2381 = vadd.f32 0.0, %v2380
  %v2382 = vpop.f32.mrf.mxu0
  %2383 = vdwg.mxu0
  %2384 = vmatpush.bf16.msra.mxu0 0
  %2385 = vmatpush.bf16.msra.mxu0 0
  %2386 = vmatpush.bf16.msra.mxu0 0
  %2387 = vmatpush.bf16.msra.mxu0 0
  %2388 = vmatpush.bf16.msra.mxu0 %v2359
  %2389 = vmatpush.bf16.msra.mxu0 %v2357
  %2390 = vmatpush.bf16.msra.mxu0 %v2355
  %2391 = vmatpush.bf16.msra.mxu0 %v2353
  %2392 = vmatmul.bf16.gmra.mxu0 %v2369
  %v2393 = vpop.f32.mrf.mxu0
  %v2394 = vadd.f32 0.0, %v2393
  %v2395 = vpop.f32.mrf.mxu0
  %2396 = vdwg.mxu0
  %v2397 = vld [vmem:[#allocation2 + $0x30] sm:$0xc0]
  %v2398 = vld [vmem:[#allocation2 + $0x38] sm:$0xc0]
  %v2401 = vrot.slane %v2381, 2
  %v2402 = vrot.slane %v2394, 2
  %v2405 = vadd.f32 %v2397, %v2401
  %v2406 = vadd.f32 %v2398, %v2402
  %v2407 = vxor.u32 %v2405, 2147483648
  %v2408 = vmul.f32 %v2407, 1.442695
  %v2409 = vpow.pop %v2408
  %v2410 = vadd.f32 %v2409, 1.0
  %v2411 = vrcp.pop %v2410
  %v2412 = vmul.f32 %v2410, %v2411
  %v2413 = vsub.f32 1.0, %v2412
  %v2414 = vmul.f32 %v2411, %v2413
  %v2415 = vadd.f32 %v2411, %v2414
  %vm2416 = vweird.f32 %v2410
  %vm2417 = vweird.f32 %v2411
  %vm2418 = vmor %vm2416, %vm2417
  %v2419 = vsel %vm2418, %v2411, %v2415
  %v2420 = vand.u32 2147483647, %v2410
  %vm2421 = vcmp.eq.f32.partialorder %v2420, 8.507059e+37
  %v2422 = vand.u32 %v2410, 2147483648
  %v2423 = vor.u32 1.1754944e-38, %v2422
  %v2424 = vsel %vm2421, %v2423, %v2419
  %v2425 = vmul.f32 1.0, %v2424
  %v2426 = vtanh.pop %v2406
  %v2427 = vxor.u32 %v2406, 2147483648
  %v2428 = vmul.f32 %v2427, 1.442695
  %v2429 = vpow.pop %v2428
  %v2430 = vadd.f32 %v2429, 1.0
  %v2431 = vrcp.pop %v2430
  %v2432 = vmul.f32 %v2430, %v2431
  %v2433 = vsub.f32 1.0, %v2432
  %v2434 = vmul.f32 %v2431, %v2433
  %v2435 = vadd.f32 %v2431, %v2434
  %vm2436 = vweird.f32 %v2430
  %vm2437 = vweird.f32 %v2431
  %vm2438 = vmor %vm2436, %vm2437
  %v2439 = vsel %vm2438, %v2431, %v2435
  %v2440 = vand.u32 2147483647, %v2430
  %vm2441 = vcmp.eq.f32.partialorder %v2440, 8.507059e+37
  %v2442 = vand.u32 %v2430, 2147483648
  %v2443 = vor.u32 1.1754944e-38, %v2442
  %v2444 = vsel %vm2441, %v2443, %v2439
  %v2445 = vmul.f32 1.0, %v2444
  %v2447 = vrot.slane %v2307, 6
  %v2449 = vmul.f32 %v2425, %v2447
  %v2450 = vmul.f32 %v2425, %v2426
  %2452 = vrot.lane.b32.xlu0 %v2450, 64
  %v2453 = vpop.permute.xlu0 %2452
  %v2455 = vadd.f32 %v2449, %v2453
  %v2456 = vtanh.pop %v2455
  %v2457 = vmul.f32 %v2445, %v2456
  %2459 = vrot.lane.b32.xlu0 %v2457, 64
  %v2460 = vpop.permute.xlu0 %2459
  %2462 = vst.msk [vmem:[%s4 + $0x18] sm:$0xc0] %vm706, %v2460
  // Predicated region
  $region18: #{row_encoder_forward.1} parent=0 // pred_check
    _
  $region19: #{row_encoder_forward.1} parent=0 // pred_check_branch
    %2464 = sbr.rel (0) target = $region21
  $region20: #{row_encoder_forward.1} parent=0 // pred_region
    _
  $region21: #{row_encoder_forward.1} parent=0 // pred_fallthru
    _
  // Predicated region
  $region22: #{row_encoder_forward.1} parent=0 // pred_check
    _
  $region23: #{row_encoder_forward.1} parent=0 // pred_check_branch
    %2466 = sbr.rel (0) target = $region25
  $region24: #{row_encoder_forward.1} parent=0 // pred_region
    _
  $region25: #{row_encoder_forward.1} parent=0 // pred_fallthru
    _

</llo_original>
